<compile_context>
chip_gen: v7x
topology: tpu7x:2x2x1
jax: 0.10.0
libtpu: 0.0.40
codegen_flags: <defaults>
</compile_context>

<pallas_src>
import functools

import jax
import jax.numpy as jnp
from jax.experimental import pallas as pl
from jax.experimental.pallas import tpu as pltpu

NEG_SLOPE = 0.02
GN_EPS = 1e-5


def _leaky_relu(x):
    return jnp.where(x >= 0, x, NEG_SLOPE * x)


def _make_kernel(emit_res, apply_norm, apply_activation,
                 Cin, kh, kw, Ho, Wo, stride, out_dtype):
    HW = Ho * Wo

    def kernel(xp_ref, w_ref, b_ref, g_ref, beta_ref, *out_refs):
        out_ref = out_refs[0]
        res_ref = out_refs[1] if emit_res else None
        B = out_ref.shape[0]
        Cout = out_ref.shape[1]

        # ---- fused im2col: (Cin, B, Hp, Wp) -> (K, B*HW), all in VMEM -------
        # Full-tile bf16 load, then f32 slicing/reshaping (robust layout path).
        # Patch-row order is (i, j, c); the wrapper reorders the weight to
        # match (weight.transpose(0, 2, 3, 1).reshape(Cout, K)).
        xpad = xp_ref[...].astype(jnp.float32)
        pieces = []
        for i in range(kh):
            for j in range(kw):
                if stride == 1:
                    win = xpad[:, :, i:i + Ho, j:j + Wo]
                else:
                    win = xpad[:, :,
                               i:i + stride * (Ho - 1) + 1:stride,
                               j:j + stride * (Wo - 1) + 1:stride]
                pieces.append(win.reshape(Cin, B * HW))
        patches = jnp.concatenate(pieces, axis=0).astype(jnp.bfloat16)  # (K, B*HW)

        # ---- single batched MXU matmul for the whole block of B samples -----
        conv = jnp.dot(w_ref[...], patches,
                       preferred_element_type=jnp.float32)          # (Cout, B*HW)
        conv = conv + b_ref[...]                                     # bias (hoisted)

        gamma = g_ref[...]                                           # (Cout, 1)
        beta = beta_ref[...]                                         # (Cout, 1)
        inv_n = 1.0 / (Cout * HW)

        # ---- per-sample GroupNorm(1 group) + LeakyReLU on lane-aligned slices
        # B is kept small by _pick_samples_per_block, so a static loop is fine.
        for b in range(B):
            conv_b = conv[:, b * HW:(b + 1) * HW]                    # (Cout, HW)
            if emit_res:
                res_b = _leaky_relu(conv_b) if apply_activation else conv_b
                res_ref[b] = res_b.astype(out_dtype)
            if apply_norm:
                mean = jnp.sum(conv_b, keepdims=True) * inv_n        # (1, 1)
                centered = conv_b - mean                             # two-pass stats
                var = jnp.sum(centered * centered, keepdims=True) * inv_n
                scale = gamma * jax.lax.rsqrt(var + GN_EPS)          # folded affine
                y = centered * scale + beta
            else:
                y = conv_b
            if apply_activation:
                y = _leaky_relu(y)
            out_ref[b] = y.astype(out_dtype)

    return kernel


def _tpu_vmem_capacity_bytes():
    try:
        info = pltpu.get_tpu_info()
        for name in ("vmem_capacity_bytes", "vmem_bytes", "vmem_size_bytes"):
            cap = getattr(info, name, None)
            if cap:
                return int(cap)
    except Exception:
        pass
    return 64 << 20  # conservative fallback (v7x-class VMEM)


def _pick_samples_per_block(N, Cin, Hp, Wp, Cout, HW, K, n_out):
    """Samples folded into one grid step, tuned per TPU generation."""
    vmem_cap = _tpu_vmem_capacity_bytes()
    two_tc_small_vmem = vmem_cap <= (64 << 20)          # v7x-class chip
    # v5e/v6e: 128 MiB VMEM, 1 TC -> big blocks (fewer ~0.35us grid steps).
    # v7x: 64 MiB VMEM, 2 TCs -> smaller budget + keep >= 2 grid steps.
    budget = (12 << 20) if two_tc_small_vmem else (28 << 20)

    in_ps = Cin * Hp * Wp * 2                   # bf16 padded-image block
    out_ps = n_out * Cout * HW * 2              # bf16 outputs
    scr_ps = K * HW * 4 + 2 * Cout * HW * 4     # f32 patches + conv intermediates
    per_sample = 2 * (in_ps + out_ps) + scr_ps  # x2: double-buffered pipeline
    fixed = 2 * (Cout * K * 2 + 3 * Cout * 4)

    max_b = max(1, int((budget - fixed) // per_sample))
    if two_tc_small_vmem and N >= 2:
        max_b = min(max_b, N // 2)              # keep >= 2 grid steps for 2 TCs
    max_b = min(max_b, 16)                      # bound the unrolled stats loop
    # TODO(synk): for very large N with tiny images, switch the per-sample
    # stats loop to lax.fori_loop and raise this cap.

    best = 1
    for d in range(1, N + 1):
        if N % d == 0 and d <= max_b:
            best = d
    return best, two_tc_small_vmem


@functools.partial(jax.jit, static_argnames=("stride", "residual", "apply_norm",
                                              "apply_activation", "out_dtype"))
def conv_layer_forward(x, weight, bias, gamma, beta, *, stride=1, residual=True,
                       apply_norm=True, apply_activation=True,
                       out_dtype=jnp.bfloat16):
    """x: (N, Cin, H, W) f32; weight: (Cout, Cin, kh, kw); bias/gamma/beta: (Cout,)."""
    N, Cin, H, W = x.shape
    Cout, _, kh, kw = weight.shape
    ph, pw = kh // 2, kw // 2
    Hp, Wp = H + 2 * ph, W + 2 * pw
    Ho = (Hp - kh) // stride + 1
    Wo = (Wp - kw) // stride + 1
    HW = Ho * Wo
    K = Cin * kh * kw

    # Replicate ('edge') padding + NCHW -> (Cin, N, Hp, Wp): the only HBM slab
    # the kernel reads (1x the input, not kh*kw-expanded), bf16 to halve BW.
    xp = jnp.pad(x, ((0, 0), (0, 0), (ph, ph), (pw, pw)), mode="edge")
    xp = jnp.transpose(xp, (1, 0, 2, 3)).astype(jnp.bfloat16)

    # Patch-row order in the kernel is (i, j, c): reorder the weight to match.
    w2 = jnp.transpose(weight, (0, 2, 3, 1)).reshape(Cout, K).astype(jnp.bfloat16)
    b2 = bias.reshape(Cout, 1).astype(jnp.float32)
    g2 = gamma.reshape(Cout, 1).astype(jnp.float32)
    be2 = beta.reshape(Cout, 1).astype(jnp.float32)

    n_out = 2 if residual else 1
    B, two_tc = _pick_samples_per_block(N, Cin, Hp, Wp, Cout, HW, K, n_out)

    out_block = pl.BlockSpec((B, Cout, HW), lambda i: (i, 0, 0))
    out_struct = jax.ShapeDtypeStruct((N, Cout, HW), out_dtype)
    if residual:
        out_shape = (out_struct, out_struct)
        out_specs = (out_block, out_block)
    else:
        out_shape = out_struct
        out_specs = out_block

    # Scoped-VMEM: only raise the limit when the working set needs it, and cap
    # well below physical capacity (64 MiB on v7x vs 128 MiB on v5e/v6e).
    block_bytes = (2 * B * Cin * Hp * Wp * 2
                   + n_out * 2 * B * Cout * HW * 2
                   + 2 * (Cout * K * 2 + 3 * Cout * 4)
                   + B * (K * HW * 4 + 2 * Cout * HW * 4))
    vmem_limit = None
    if block_bytes > (12 << 20):
        cap = (48 << 20) if two_tc else (96 << 20)
        vmem_limit = int(min(2 * block_bytes, cap))

    cost = pl.CostEstimate(
        flops=2 * N * Cout * K * HW + 10 * N * Cout * HW,
        transcendentals=N,
        bytes_accessed=(N * Cin * Hp * Wp * 2 + Cout * K * 2 + 3 * Cout * 4
                        + n_out * N * Cout * HW * 2),
    )

    result = pl.pallas_call(
        _make_kernel(residual, apply_norm, apply_activation,
                     Cin, kh, kw, Ho, Wo, stride, out_dtype),
        out_shape=out_shape,
        grid=(N // B,),
        in_specs=[
            pl.BlockSpec((Cin, B, Hp, Wp), lambda i: (0, i, 0, 0)),
            pl.BlockSpec((Cout, K), lambda i: (0, 0)),
            pl.BlockSpec((Cout, 1), lambda i: (0, 0)),
            pl.BlockSpec((Cout, 1), lambda i: (0, 0)),
            pl.BlockSpec((Cout, 1), lambda i: (0, 0)),
        ],
        out_specs=out_specs,
        compiler_params=pltpu.CompilerParams(
            dimension_semantics=("parallel",),
            vmem_limit_bytes=vmem_limit),
        cost_estimate=cost,
    )(xp, w2, b2, g2, be2)

    if residual:
        out, res = result
        return out.reshape(N, Cout, Ho, Wo), res.reshape(N, Cout, Ho, Wo)
    return result.reshape(N, Cout, Ho, Wo)


def _reference(x, weight, bias, gamma, beta, stride=1, apply_norm=True,
               apply_activation=True):
    """Pure-JAX reference mirroring the PyTorch module (conv inputs cast to
    bf16 with f32 accumulation, matching the kernel's MXU precision)."""
    ph, pw = weight.shape[2] // 2, weight.shape[3] // 2
    xp = jnp.pad(x, ((0, 0), (0, 0), (ph, ph), (pw, pw)), mode="edge")
    conv = jax.lax.conv_general_dilated(
        xp.astype(jnp.bfloat16), weight.astype(jnp.bfloat16),
        (stride, stride), "VALID",
        dimension_numbers=("NCHW", "OIHW", "NCHW"),
        preferred_element_type=jnp.float32) + bias[None, :, None, None]
    res = conv
    out = conv
    if apply_norm:
        mean = jnp.mean(conv, axis=(1, 2, 3), keepdims=True)
        var = jnp.mean((conv - mean) ** 2, axis=(1, 2, 3), keepdims=True)
        out = (conv - mean) * jax.lax.rsqrt(var + GN_EPS)
        out = out * gamma[None, :, None, None] + beta[None, :, None, None]
    if apply_activation:
        out = _leaky_relu(out)
        res = _leaky_relu(res)
    return out, res


if __name__ == "__main__":
    # ConvLayer(4, 8, kernel_size=3, stride_size=1, apply_norm=True,
    #           apply_activation=True, residual=True)
    N, Cin, H, W = 2, 4, 16, 16
    Cout, ksz, stride = 8, 3, 1

    key = jax.random.PRNGKey(0)
    kx, kw_, kb, kg, kbe = jax.random.split(key, 5)
    x = jax.random.normal(kx, (N, Cin, H, W), dtype=jnp.float32)
    weight = jax.random.normal(kw_, (Cout, Cin, ksz, ksz), dtype=jnp.float32) * 0.1
    bias = jax.random.normal(kb, (Cout,), dtype=jnp.float32) * 0.1
    gamma = 1.0 + 0.1 * jax.random.normal(kg, (Cout,), dtype=jnp.float32)
    beta = 0.1 * jax.random.normal(kbe, (Cout,), dtype=jnp.float32)

    out, res = conv_layer_forward(x, weight, bias, gamma, beta,
                                  stride=stride, residual=True)
    jax.block_until_ready((out, res))

    ref_out, ref_res = _reference(x, weight, bias, gamma, beta, stride=stride)
    assert out.shape == (N, Cout, H, W) and res.shape == (N, Cout, H, W)
    # Kernel emits bf16 (halved HBM writeback) -> compare with bf16-level tol.
    assert jnp.allclose(out.astype(jnp.float32), ref_out, rtol=2e-2, atol=2e-2)
    assert jnp.allclose(res.astype(jnp.float32), ref_res, rtol=2e-2, atol=2e-2)

    # residual=False path: single output, single HBM writeback.
    out_only = conv_layer_forward(x, weight, bias, gamma, beta,
                                  stride=stride, residual=False)
    jax.block_until_ready(out_only)
    assert out_only.shape == (N, Cout, H, W)
    assert jnp.allclose(out_only.astype(jnp.float32), ref_out, rtol=2e-2, atol=2e-2)

    print("KERNEL_OK")
</pallas_src>

<mosaic_0001>
module attributes {stable_mosaic.version = 11 : i64} {
  func.func @kernel(%arg0: i32, %arg1: memref<4x1x18x18xbf16, #tpu.memory_space<vmem>>, %arg2: memref<8x36xbf16, #tpu.memory_space<vmem>>, %arg3: memref<8x1xf32, #tpu.memory_space<vmem>>, %arg4: memref<8x1xf32, #tpu.memory_space<vmem>>, %arg5: memref<8x1xf32, #tpu.memory_space<vmem>>, %arg6: memref<1x8x256xbf16, #tpu.memory_space<vmem>>, %arg7: memref<1x8x256xbf16, #tpu.memory_space<vmem>>) attributes {dimension_semantics = [#tpu.dimension_semantics<parallel>], iteration_bounds = array<i64: 2>, scalar_prefetch = 0 : i64, scratch_operands = 0 : i64, tpu.core_type = #tpu.core_type<tc>, window_params = [{transform_indices = @transform_0, window_bounds = array<i64: 4, 1, 18, 18>}, {pipeline_mode = #tpu.pipeline_mode<synchronous>, transform_indices = @transform_1, window_bounds = array<i64: 8, 36>}, {pipeline_mode = #tpu.pipeline_mode<synchronous>, transform_indices = @transform_2, window_bounds = array<i64: 8, 1>}, {pipeline_mode = #tpu.pipeline_mode<synchronous>, transform_indices = @transform_3, window_bounds = array<i64: 8, 1>}, {pipeline_mode = #tpu.pipeline_mode<synchronous>, transform_indices = @transform_4, window_bounds = array<i64: 8, 1>}, {transform_indices = @transform_5, window_bounds = array<i64: 1, 8, 256>}, {transform_indices = @transform_6, window_bounds = array<i64: 1, 8, 256>}]} {
    %c0 = arith.constant 0 : index
    %c0_0 = arith.constant 0 : index
    %c0_1 = arith.constant 0 : index
    %c0_2 = arith.constant 0 : index
    %0 = vector.load %arg1[%c0, %c0_0, %c0_1, %c0_2] : memref<4x1x18x18xbf16, #tpu.memory_space<vmem>>, vector<4x1x18x18xbf16>
    %1 = arith.extf %0 : vector<4x1x18x18xbf16> to vector<4x1x18x18xf32>
    %2 = vector.extract_strided_slice %1 {offsets = [0, 0, 0, 0], sizes = [4, 1, 16, 16], strides = [1, 1, 1, 1]} : vector<4x1x18x18xf32> to vector<4x1x16x16xf32>
    %3 = vector.shape_cast %2 : vector<4x1x16x16xf32> to vector<4x256xf32>
    %4 = vector.extract_strided_slice %1 {offsets = [0, 0, 0, 1], sizes = [4, 1, 16, 16], strides = [1, 1, 1, 1]} : vector<4x1x18x18xf32> to vector<4x1x16x16xf32>
    %5 = vector.shape_cast %4 : vector<4x1x16x16xf32> to vector<4x256xf32>
    %6 = vector.extract_strided_slice %1 {offsets = [0, 0, 0, 2], sizes = [4, 1, 16, 16], strides = [1, 1, 1, 1]} : vector<4x1x18x18xf32> to vector<4x1x16x16xf32>
    %7 = vector.shape_cast %6 : vector<4x1x16x16xf32> to vector<4x256xf32>
    %8 = vector.extract_strided_slice %1 {offsets = [0, 0, 1, 0], sizes = [4, 1, 16, 16], strides = [1, 1, 1, 1]} : vector<4x1x18x18xf32> to vector<4x1x16x16xf32>
    %9 = vector.shape_cast %8 : vector<4x1x16x16xf32> to vector<4x256xf32>
    %10 = vector.extract_strided_slice %1 {offsets = [0, 0, 1, 1], sizes = [4, 1, 16, 16], strides = [1, 1, 1, 1]} : vector<4x1x18x18xf32> to vector<4x1x16x16xf32>
    %11 = vector.shape_cast %10 : vector<4x1x16x16xf32> to vector<4x256xf32>
    %12 = vector.extract_strided_slice %1 {offsets = [0, 0, 1, 2], sizes = [4, 1, 16, 16], strides = [1, 1, 1, 1]} : vector<4x1x18x18xf32> to vector<4x1x16x16xf32>
    %13 = vector.shape_cast %12 : vector<4x1x16x16xf32> to vector<4x256xf32>
    %14 = vector.extract_strided_slice %1 {offsets = [0, 0, 2, 0], sizes = [4, 1, 16, 16], strides = [1, 1, 1, 1]} : vector<4x1x18x18xf32> to vector<4x1x16x16xf32>
    %15 = vector.shape_cast %14 : vector<4x1x16x16xf32> to vector<4x256xf32>
    %16 = vector.extract_strided_slice %1 {offsets = [0, 0, 2, 1], sizes = [4, 1, 16, 16], strides = [1, 1, 1, 1]} : vector<4x1x18x18xf32> to vector<4x1x16x16xf32>
    %17 = vector.shape_cast %16 : vector<4x1x16x16xf32> to vector<4x256xf32>
    %18 = vector.extract_strided_slice %1 {offsets = [0, 0, 2, 2], sizes = [4, 1, 16, 16], strides = [1, 1, 1, 1]} : vector<4x1x18x18xf32> to vector<4x1x16x16xf32>
    %19 = vector.shape_cast %18 : vector<4x1x16x16xf32> to vector<4x256xf32>
    %20 = tpu.concatenate %3, %5, %7, %9, %11, %13, %15, %17, %19 in 0 : vector<4x256xf32>, vector<4x256xf32>, vector<4x256xf32>, vector<4x256xf32>, vector<4x256xf32>, vector<4x256xf32>, vector<4x256xf32>, vector<4x256xf32>, vector<4x256xf32> -> vector<36x256xf32>
    %21 = arith.truncf %20 : vector<36x256xf32> to vector<36x256xbf16>
    %c0_3 = arith.constant 0 : index
    %c0_4 = arith.constant 0 : index
    %22 = vector.load %arg2[%c0_3, %c0_4] : memref<8x36xbf16, #tpu.memory_space<vmem>>, vector<8x36xbf16>
    %cst = arith.constant dense<0.000000e+00> : vector<8x256xf32>
    %23 = tpu.matmul %22, %21, %cst {dimension_numbers = #tpu.dot_dimension_numbers<[1], [0], [0], [1], [0, 0, 1, 1], [], []>} : vector<8x36xbf16>, vector<36x256xbf16>, vector<8x256xf32> -> vector<8x256xf32>
    %c0_5 = arith.constant 0 : index
    %c0_6 = arith.constant 0 : index
    %24 = vector.load %arg3[%c0_5, %c0_6] : memref<8x1xf32, #tpu.memory_space<vmem>>, vector<8x1xf32>
    %25 = vector.broadcast %24 : vector<8x1xf32> to vector<8x256xf32>
    %26 = arith.addf %23, %25 : vector<8x256xf32>
    %c0_7 = arith.constant 0 : index
    %c0_8 = arith.constant 0 : index
    %27 = vector.load %arg4[%c0_7, %c0_8] : memref<8x1xf32, #tpu.memory_space<vmem>>, vector<8x1xf32>
    %c0_9 = arith.constant 0 : index
    %c0_10 = arith.constant 0 : index
    %28 = vector.load %arg5[%c0_9, %c0_10] : memref<8x1xf32, #tpu.memory_space<vmem>>, vector<8x1xf32>
    %cst_11 = arith.constant 0.000000e+00 : f32
    %29 = vector.broadcast %cst_11 : f32 to vector<8x256xf32>
    %30 = arith.cmpf oge, %26, %29 : vector<8x256xf32>
    %cst_12 = arith.constant 2.000000e-02 : f32
    %31 = vector.broadcast %cst_12 : f32 to vector<8x256xf32>
    %32 = arith.mulf %31, %26 : vector<8x256xf32>
    %33 = arith.select %30, %26, %32 : vector<8x256xi1>, vector<8x256xf32>
    %34 = arith.truncf %33 : vector<8x256xf32> to vector<8x256xbf16>
    %c0_13 = arith.constant 0 : index
    %c0_14 = arith.constant 0 : index
    %c0_15 = arith.constant 0 : index
    %35 = vector.load %arg7[%c0_13, %c0_14, %c0_15] : memref<1x8x256xbf16, #tpu.memory_space<vmem>>, vector<1x8x256xbf16>
    %36 = vector.shape_cast %35 : vector<1x8x256xbf16> to vector<8x256xbf16>
    %37 = vector.shape_cast %34 : vector<8x256xbf16> to vector<1x8x256xbf16>
    tpu.vector_store %arg7[%c0_13, %c0_14, %c0_15], %37 {strides = array<i32>} : memref<1x8x256xbf16, #tpu.memory_space<vmem>>, vector<1x8x256xbf16>,
    %38 = vector.shape_cast %26 : vector<8x256xf32> to vector<1x8x256xf32>
    %cst_16 = arith.constant dense<0.000000e+00> : vector<1xf32>
    %39 = vector.multi_reduction <add>, %38, %cst_16 [1, 2] : vector<1x8x256xf32> to vector<1xf32>
    %40 = vector.shape_cast %39 : vector<1xf32> to vector<1x1x1xf32>
    %41 = vector.extract %40[0, 0, 0] : f32 from vector<1x1x1xf32>
    %42 = vector.broadcast %41 : f32 to vector<1x1xf32>
    %cst_17 = arith.constant 4.8828125E-4 : f32
    %43 = vector.broadcast %cst_17 : f32 to vector<1x1xf32>
    %44 = arith.mulf %42, %43 : vector<1x1xf32>
    %45 = vector.broadcast %44 : vector<1x1xf32> to vector<8x256xf32>
    %46 = arith.subf %26, %45 : vector<8x256xf32>
    %47 = arith.mulf %46, %46 : vector<8x256xf32>
    %48 = vector.shape_cast %47 : vector<8x256xf32> to vector<1x8x256xf32>
    %cst_18 = arith.constant dense<0.000000e+00> : vector<1xf32>
    %49 = vector.multi_reduction <add>, %48, %cst_18 [1, 2] : vector<1x8x256xf32> to vector<1xf32>
    %50 = vector.shape_cast %49 : vector<1xf32> to vector<1x1x1xf32>
    %51 = vector.extract %50[0, 0, 0] : f32 from vector<1x1x1xf32>
    %52 = vector.broadcast %51 : f32 to vector<1x1xf32>
    %cst_19 = arith.constant 4.8828125E-4 : f32
    %53 = vector.broadcast %cst_19 : f32 to vector<1x1xf32>
    %54 = arith.mulf %52, %53 : vector<1x1xf32>
    %cst_20 = arith.constant 9.99999974E-6 : f32
    %55 = vector.broadcast %cst_20 : f32 to vector<1x1xf32>
    %56 = arith.addf %54, %55 : vector<1x1xf32>
    %57 = math.rsqrt %56 : vector<1x1xf32>
    %58 = vector.broadcast %57 : vector<1x1xf32> to vector<8x1xf32>
    %59 = arith.mulf %27, %58 : vector<8x1xf32>
    %60 = vector.broadcast %59 : vector<8x1xf32> to vector<8x256xf32>
    %61 = arith.mulf %46, %60 : vector<8x256xf32>
    %62 = vector.broadcast %28 : vector<8x1xf32> to vector<8x256xf32>
    %63 = arith.addf %61, %62 : vector<8x256xf32>
    %cst_21 = arith.constant 0.000000e+00 : f32
    %64 = vector.broadcast %cst_21 : f32 to vector<8x256xf32>
    %65 = arith.cmpf oge, %63, %64 : vector<8x256xf32>
    %cst_22 = arith.constant 2.000000e-02 : f32
    %66 = vector.broadcast %cst_22 : f32 to vector<8x256xf32>
    %67 = arith.mulf %66, %63 : vector<8x256xf32>
    %68 = arith.select %65, %63, %67 : vector<8x256xi1>, vector<8x256xf32>
    %69 = arith.truncf %68 : vector<8x256xf32> to vector<8x256xbf16>
    %c0_23 = arith.constant 0 : index
    %c0_24 = arith.constant 0 : index
    %c0_25 = arith.constant 0 : index
    %70 = vector.load %arg6[%c0_23, %c0_24, %c0_25] : memref<1x8x256xbf16, #tpu.memory_space<vmem>>, vector<1x8x256xbf16>
    %71 = vector.shape_cast %70 : vector<1x8x256xbf16> to vector<8x256xbf16>
    %72 = vector.shape_cast %69 : vector<8x256xbf16> to vector<1x8x256xbf16>
    tpu.vector_store %arg6[%c0_23, %c0_24, %c0_25], %72 {strides = array<i32>} : memref<1x8x256xbf16, #tpu.memory_space<vmem>>, vector<1x8x256xbf16>,
    return
  }
  func.func @transform_0(%arg0: i32) -> (i32, i32, i32, i32) {
    %c0_i32 = arith.constant 0 : i32
    %c0_i32_0 = arith.constant 0 : i32
    %c0_i32_1 = arith.constant 0 : i32
    %c0_i32_2 = arith.constant 0 : i32
    return %c0_i32, %arg0, %c0_i32_0, %c0_i32_1 : i32, i32, i32, i32
  }
  func.func @transform_1(%arg0: i32) -> (i32, i32) {
    %c0_i32 = arith.constant 0 : i32
    %c0_i32_0 = arith.constant 0 : i32
    %c0_i32_1 = arith.constant 0 : i32
    return %c0_i32, %c0_i32_0 : i32, i32
  }
  func.func @transform_2(%arg0: i32) -> (i32, i32) {
    %c0_i32 = arith.constant 0 : i32
    %c0_i32_0 = arith.constant 0 : i32
    %c0_i32_1 = arith.constant 0 : i32
    return %c0_i32, %c0_i32_0 : i32, i32
  }
  func.func @transform_3(%arg0: i32) -> (i32, i32) {
    %c0_i32 = arith.constant 0 : i32
    %c0_i32_0 = arith.constant 0 : i32
    %c0_i32_1 = arith.constant 0 : i32
    return %c0_i32, %c0_i32_0 : i32, i32
  }
  func.func @transform_4(%arg0: i32) -> (i32, i32) {
    %c0_i32 = arith.constant 0 : i32
    %c0_i32_0 = arith.constant 0 : i32
    %c0_i32_1 = arith.constant 0 : i32
    return %c0_i32, %c0_i32_0 : i32, i32
  }
  func.func @transform_5(%arg0: i32) -> (i32, i32, i32) {
    %c0_i32 = arith.constant 0 : i32
    %c0_i32_0 = arith.constant 0 : i32
    %c0_i32_1 = arith.constant 0 : i32
    return %arg0, %c0_i32, %c0_i32_0 : i32, i32, i32
  }
  func.func @transform_6(%arg0: i32) -> (i32, i32, i32) {
    %c0_i32 = arith.constant 0 : i32
    %c0_i32_0 = arith.constant 0 : i32
    %c0_i32_1 = arith.constant 0 : i32
    return %arg0, %c0_i32, %c0_i32_0 : i32, i32, i32
  }
}

</mosaic_0001>

<llo_original>
// kernel: conv_layer_forward.1
$region0: #{conv_layer_forward.1}
  #allocation0 [shape = 'u32[]', space=smem, size = 0x4, offset = 0x4, fixed_abs, tag = 'smem constant byte address 0x4 - core index']
  #allocation1 [shape = 'u32[144,128]{1,0:T(1,128)}', space=vmem, size = 0x12000, scoped, tag = 'internal scratch']
  %s0 = inlined_call_operand.vmem [shape: bf16[4,2,18,18], index: 0, kind: input, shape index: {}]
  %s1 = inlined_call_operand.vmem [shape: bf16[8,36], index: 1, kind: input, shape index: {}]
  %s2 = inlined_call_operand.vmem [shape: f32[8,1], index: 2, kind: input, shape index: {}]
  %s3 = inlined_call_operand.vmem [shape: f32[8,1], index: 3, kind: input, shape index: {}]
  %s4 = inlined_call_operand.vmem [shape: f32[8,1], index: 4, kind: input, shape index: {}]
  %s5 = inlined_call_operand.vmem [shape: bf16[2,8,256], index: 5, kind: output, shape index: {0}]
  %s6 = inlined_call_operand.vmem [shape: bf16[2,8,256], index: 6, kind: output, shape index: {1}]
  %7 = xla_tuple %s5, %s6
  %s8 = sld [smem:[#allocation0]]
  $region102: #{conv_layer_forward.1} parent=0
    _
  %s10 = ssub.s32 1, %s8
  %s11 = scalar_select 0, %s10, %s8
  $region1: #{conv_layer_forward.1} parent=0
    #allocation2 [shape = 'u8[49152]{0}', space=vmem, size = 0xc000, scoped, tag = 'input window, operand 0']
    loop: start=0, step=1, limit=4
    $region2: #{conv_layer_forward.1} parent=1 // loop_pre_header
      _
    $region3: #{conv_layer_forward.1} parent=1 // loop_header
      %s13 = sphi 0, %s17
      %p14 = scmp.ge.s32.totalorder %s13, 4
      %s23 = sphi 0, %s25
      %s26 = sphi 0, %s23
      %s27 = sphi 0, %s26
      %s43 = sphi 0, %s27
      %s47 = sphi 0, %s47
      %s49 = sphi 0, %s47
      %s50 = sphi 0, %s49
      %s64 = sphi 0, %s50
      %s68 = sphi 0, %s68
      %s70 = sphi 0, %s68
      %s71 = sphi 0, %s70
      %s85 = sphi 0, %s71
      %s89 = sphi 0, %s89
      %s91 = sphi 0, %s89
      %s92 = sphi 0, %s91
      %s106 = sphi 0, %s92
      %s110 = sphi 0, %s110
      %s112 = sphi 0, %s110
      %s113 = sphi 0, %s112
      %s127 = sphi 0, %s113
      %s133 = sphi 0, %s135
      %s136 = sphi 0, %s133
      %s137 = sphi 0, %s136
      %s153 = sphi 0, %s137
      %s159 = sphi 0, %s161
      %s162 = sphi 0, %s159
      %s163 = sphi 0, %s162
      %s179 = sphi 0, %s163
    $region4: #{conv_layer_forward.1} parent=1 // loop_header_branch
      %16 = sbr.rel (%p14) target = $region8
    $region5: #{conv_layer_forward.1} parent=1 // loop_body
      %s18 = ssub.s32 %s13, 1
      %s19 = ssub.s32 %s13, 2
      %s20 = sadd.s32 %s13, 1
      %s21 = ssub.s32 %s13, %s20
      %p22 = scmp.eq.s32.totalorder %s21, 0
      %s24 = sadd.s32 %s23, 1
      %s25 = scalar_select %p22, %s23, %s24
      %p28 = pneg %p22
      %p29 = scmp.eq.s32.totalorder %s13, 1
      %p30 = por %p28, %p29
      %p31 = scmp.ne.s32.totalorder %s23, %s26
      %p32 = scmp.eq.s32.totalorder %s13, 0
      %p33 = por %p31, %p32
      %p34 = scmp.ne.s32.totalorder %s23, %s26
      %p35 = scmp.eq.s32.totalorder %s18, 1
      %p36 = por %p34, %p35
      %p37 = scmp.ne.s32.totalorder %s26, %s27
      %p38 = scmp.eq.s32.totalorder %s18, 0
      %p39 = por %p37, %p38
      %p40 = scmp.ne.s32.totalorder %s26, %s27
      %p41 = scmp.eq.s32.totalorder %s19, 1
      %p42 = por %p40, %p41
      %p44 = scmp.ne.s32.totalorder %s27, %s43
      %p45 = scmp.eq.s32.totalorder %s19, 0
      %p46 = por %p44, %p45
      %s48 = sadd.s32 %s47, 1
      %p51 = scmp.eq.s32.totalorder %s13, 1
      %p52 = scmp.ne.s32.totalorder %s47, %s49
      %p53 = scmp.eq.s32.totalorder %s13, 0
      %p54 = por %p52, %p53
      %p55 = scmp.ne.s32.totalorder %s47, %s49
      %p56 = scmp.eq.s32.totalorder %s18, 1
      %p57 = por %p55, %p56
      %p58 = scmp.ne.s32.totalorder %s49, %s50
      %p59 = scmp.eq.s32.totalorder %s18, 0
      %p60 = por %p58, %p59
      %p61 = scmp.ne.s32.totalorder %s49, %s50
      %p62 = scmp.eq.s32.totalorder %s19, 1
      %p63 = por %p61, %p62
      %p65 = scmp.ne.s32.totalorder %s50, %s64
      %p66 = scmp.eq.s32.totalorder %s19, 0
      %p67 = por %p65, %p66
      %s69 = sadd.s32 %s68, 1
      %p72 = scmp.eq.s32.totalorder %s13, 1
      %p73 = scmp.ne.s32.totalorder %s68, %s70
      %p74 = scmp.eq.s32.totalorder %s13, 0
      %p75 = por %p73, %p74
      %p76 = scmp.ne.s32.totalorder %s68, %s70
      %p77 = scmp.eq.s32.totalorder %s18, 1
      %p78 = por %p76, %p77
      %p79 = scmp.ne.s32.totalorder %s70, %s71
      %p80 = scmp.eq.s32.totalorder %s18, 0
      %p81 = por %p79, %p80
      %p82 = scmp.ne.s32.totalorder %s70, %s71
      %p83 = scmp.eq.s32.totalorder %s19, 1
      %p84 = por %p82, %p83
      %p86 = scmp.ne.s32.totalorder %s71, %s85
      %p87 = scmp.eq.s32.totalorder %s19, 0
      %p88 = por %p86, %p87
      %s90 = sadd.s32 %s89, 1
      %p93 = scmp.eq.s32.totalorder %s13, 1
      %p94 = scmp.ne.s32.totalorder %s89, %s91
      %p95 = scmp.eq.s32.totalorder %s13, 0
      %p96 = por %p94, %p95
      %p97 = scmp.ne.s32.totalorder %s89, %s91
      %p98 = scmp.eq.s32.totalorder %s18, 1
      %p99 = por %p97, %p98
      %p100 = scmp.ne.s32.totalorder %s91, %s92
      %p101 = scmp.eq.s32.totalorder %s18, 0
      %p102 = por %p100, %p101
      %p103 = scmp.ne.s32.totalorder %s91, %s92
      %p104 = scmp.eq.s32.totalorder %s19, 1
      %p105 = por %p103, %p104
      %p107 = scmp.ne.s32.totalorder %s92, %s106
      %p108 = scmp.eq.s32.totalorder %s19, 0
      %p109 = por %p107, %p108
      %s111 = sadd.s32 %s110, 1
      %p114 = scmp.eq.s32.totalorder %s13, 1
      %p115 = scmp.ne.s32.totalorder %s110, %s112
      %p116 = scmp.eq.s32.totalorder %s13, 0
      %p117 = por %p115, %p116
      %p118 = scmp.ne.s32.totalorder %s110, %s112
      %p119 = scmp.eq.s32.totalorder %s18, 1
      %p120 = por %p118, %p119
      %p121 = scmp.ne.s32.totalorder %s112, %s113
      %p122 = scmp.eq.s32.totalorder %s18, 0
      %p123 = por %p121, %p122
      %p124 = scmp.ne.s32.totalorder %s112, %s113
      %p125 = scmp.eq.s32.totalorder %s19, 1
      %p126 = por %p124, %p125
      %p128 = scmp.ne.s32.totalorder %s113, %s127
      %p129 = scmp.eq.s32.totalorder %s19, 0
      %p130 = por %p128, %p129
      %s131 = ssub.s32 %s13, %s20
      %p132 = scmp.eq.s32.totalorder %s131, 0
      %s134 = sadd.s32 %s133, 1
      %s135 = scalar_select %p132, %s133, %s134
      %p138 = pneg %p132
      %p139 = scmp.eq.s32.totalorder %s13, 1
      %p140 = por %p138, %p139
      %p141 = scmp.ne.s32.totalorder %s133, %s136
      %p142 = scmp.eq.s32.totalorder %s13, 0
      %p143 = por %p141, %p142
      %p144 = scmp.ne.s32.totalorder %s133, %s136
      %p145 = scmp.eq.s32.totalorder %s18, 1
      %p146 = por %p144, %p145
      %p147 = scmp.ne.s32.totalorder %s136, %s137
      %p148 = scmp.eq.s32.totalorder %s18, 0
      %p149 = por %p147, %p148
      %p150 = scmp.ne.s32.totalorder %s136, %s137
      %p151 = scmp.eq.s32.totalorder %s19, 1
      %p152 = por %p150, %p151
      %p154 = scmp.ne.s32.totalorder %s137, %s153
      %p155 = scmp.eq.s32.totalorder %s19, 0
      %p156 = por %p154, %p155
      %s157 = ssub.s32 %s13, %s20
      %p158 = scmp.eq.s32.totalorder %s157, 0
      %s160 = sadd.s32 %s159, 1
      %s161 = scalar_select %p158, %s159, %s160
      %p164 = pneg %p158
      %p165 = scmp.eq.s32.totalorder %s13, 1
      %p166 = por %p164, %p165
      %p167 = scmp.ne.s32.totalorder %s159, %s162
      %p168 = scmp.eq.s32.totalorder %s13, 0
      %p169 = por %p167, %p168
      %p170 = scmp.ne.s32.totalorder %s159, %s162
      %p171 = scmp.eq.s32.totalorder %s18, 1
      %p172 = por %p170, %p171
      %p173 = scmp.ne.s32.totalorder %s162, %s163
      %p174 = scmp.eq.s32.totalorder %s18, 0
      %p175 = por %p173, %p174
      %p176 = scmp.ne.s32.totalorder %s162, %s163
      %p177 = scmp.eq.s32.totalorder %s19, 1
      %p178 = por %p176, %p177
      %p180 = scmp.ne.s32.totalorder %s163, %s179
      %p181 = scmp.eq.s32.totalorder %s19, 0
      %p182 = por %p180, %p181
      %p183 = scmp.le.s32.totalorder 1, %s13
      %p184 = scmp.lt.s32.totalorder %s13, 3
      %p185 = pnand %p183, %p184
      %p186 = pneg %p185
      // Predicated region
      $region9: #{conv_layer_forward.1} parent=5 // pred_check
        _
      $region10: #{conv_layer_forward.1} parent=5 // pred_check_branch
        %188 = sbr.rel (%p185) target = $region12
      $region11: #{conv_layer_forward.1} parent=5 // pred_region
        %s189 = ssub.s32 %s13, 1
        // Predicated region
        $region13: #{conv_layer_forward.1} parent=11 // pred_check
          %p190 = pneg %p60
        $region14: #{conv_layer_forward.1} parent=11 // pred_check_branch
          %192 = sbr.rel (%p190) target = $region16
        $region15: #{conv_layer_forward.1} parent=11 // pred_region
          _
        $region16: #{conv_layer_forward.1} parent=11 // pred_fallthru
          _
        // Predicated region
        $region17: #{conv_layer_forward.1} parent=11 // pred_check
          %p193 = pneg %p81
        $region18: #{conv_layer_forward.1} parent=11 // pred_check_branch
          %195 = sbr.rel (%p193) target = $region20
        $region19: #{conv_layer_forward.1} parent=11 // pred_region
          _
        $region20: #{conv_layer_forward.1} parent=11 // pred_fallthru
          _
        // Predicated region
        $region21: #{conv_layer_forward.1} parent=11 // pred_check
          %p196 = pneg %p102
        $region22: #{conv_layer_forward.1} parent=11 // pred_check_branch
          %198 = sbr.rel (%p196) target = $region24
        $region23: #{conv_layer_forward.1} parent=11 // pred_region
          _
        $region24: #{conv_layer_forward.1} parent=11 // pred_fallthru
          _
        // Predicated region
        $region25: #{conv_layer_forward.1} parent=11 // pred_check
          %p199 = pneg %p123
        $region26: #{conv_layer_forward.1} parent=11 // pred_check_branch
          %201 = sbr.rel (%p199) target = $region28
        $region27: #{conv_layer_forward.1} parent=11 // pred_region
          _
        $region28: #{conv_layer_forward.1} parent=11 // pred_fallthru
          _
      $region12: #{conv_layer_forward.1} parent=5 // pred_fallthru
        _
      %p202 = scmp.lt.s32.totalorder %s13, 2
      // Predicated region
      $region29: #{conv_layer_forward.1} parent=5 // pred_check
        %p203 = pneg %p202
      $region30: #{conv_layer_forward.1} parent=5 // pred_check_branch
        %205 = sbr.rel (%p203) target = $region32
      $region31: #{conv_layer_forward.1} parent=5 // pred_region
        // Predicated region
        $region33: #{conv_layer_forward.1} parent=31 // pred_check
          %p206 = pneg %p33
        $region34: #{conv_layer_forward.1} parent=31 // pred_check_branch
          %208 = sbr.rel (%p206) target = $region36
        $region35: #{conv_layer_forward.1} parent=31 // pred_region
          %s209 = sand.u32 %s23, 1
          %s210 = sand.u32 %s23, 1
          %s211 = smul.addr %s210, 48
          %s212 = scalar_lea.vmem [#allocation2], %s211
          %s213 = smul.addr %s13, 3
          %s214 = smul.addr %s213, 4
          %s215 = scalar_lea.vmem %s0, %s214
          // Predicated region
          $region37: #{conv_layer_forward.1} parent=35 // pred_check
            _
          $region38: #{conv_layer_forward.1} parent=35 // pred_check_branch
            %217 = sbr.rel (0) target = $region40
          $region39: #{conv_layer_forward.1} parent=35 // pred_region
            // Predicated region
            $region41: #{conv_layer_forward.1} parent=39 // pred_check
              _
            $region42: #{conv_layer_forward.1} parent=39 // pred_check_branch
              %219 = sbr.rel target = $region44
            $region43: #{conv_layer_forward.1} parent=39 // pred_region
              // Predicated region
              $region56: #{conv_layer_forward.1} parent=43 // pred_check
                _
              $region57: #{conv_layer_forward.1} parent=43 // pred_check_branch
                %256 = sbr.rel (0) target = $region59
              $region58: #{conv_layer_forward.1} parent=43 // pred_region
                loop: start=0, step=1, limit=1
                $region60: #{conv_layer_forward.1} parent=58 // loop_pre_header
                  _
                $region61: #{conv_layer_forward.1} parent=58 // loop_header
                  %s258 = sphi 0, %s262
                  %p259 = scmp.ge.s32.totalorder %s258, 1
                  %s263 = sphi %s215, %s215
                  %s264 = sphi %s212, %s212
                $region62: #{conv_layer_forward.1} parent=58 // loop_header_branch
                  %261 = sbr.rel (%p259) target = $region66
                $region63: #{conv_layer_forward.1} parent=58 // loop_body
                  _
                $region64: #{conv_layer_forward.1} parent=58 // loop_footer
                  %s262 = sadd.s32 1, %s258
                $region65: #{conv_layer_forward.1} parent=58 // loop_footer_branch
                  %257 = sbr.rel target = $region61
                $region66: #{conv_layer_forward.1} parent=58 // loop_exit
                  _
                loop: start=0, step=1, limit=1
                $region67: #{conv_layer_forward.1} parent=58 // loop_pre_header
                  _
                $region68: #{conv_layer_forward.1} parent=58 // loop_header
                  %s267 = sphi 0, %s271
                  %p268 = scmp.ge.s32.totalorder %s267, 1
                  %s272 = sphi %s215, %s215
                  %s273 = sphi %s212, %s212
                $region69: #{conv_layer_forward.1} parent=58 // loop_header_branch
                  %270 = sbr.rel (%p268) target = $region73
                $region70: #{conv_layer_forward.1} parent=58 // loop_body
                  %v274 = vld [vmem:[%s272] sm:$0xf]
                  %275 = vst [vmem:[%s273] sm:$0xf] %v274
                  %v276 = vld [vmem:[%s272 + $0x4] sm:$0xf]
                  %277 = vst [vmem:[%s273 + $0x4] sm:$0xf] %v276
                  %v278 = vld [vmem:[%s272 + $0x8] sm:$0xf]
                  %279 = vst [vmem:[%s273 + $0x8] sm:$0xf] %v278
                  %v280 = vld [vmem:[%s272 + $0x18] sm:$0xf]
                  %281 = vst [vmem:[%s273 + $0xc] sm:$0xf] %v280
                  %v282 = vld [vmem:[%s272 + $0x1c] sm:$0xf]
                  %283 = vst [vmem:[%s273 + $0x10] sm:$0xf] %v282
                  %v284 = vld [vmem:[%s272 + $0x20] sm:$0xf]
                  %285 = vst [vmem:[%s273 + $0x14] sm:$0xf] %v284
                  %v286 = vld [vmem:[%s272 + $0x30] sm:$0xf]
                  %287 = vst [vmem:[%s273 + $0x18] sm:$0xf] %v286
                  %v288 = vld [vmem:[%s272 + $0x34] sm:$0xf]
                  %289 = vst [vmem:[%s273 + $0x1c] sm:$0xf] %v288
                  %v290 = vld [vmem:[%s272 + $0x38] sm:$0xf]
                  %291 = vst [vmem:[%s273 + $0x20] sm:$0xf] %v290
                  %v292 = vld [vmem:[%s272 + $0x48] sm:$0xf]
                  %293 = vst [vmem:[%s273 + $0x24] sm:$0xf] %v292
                  %v294 = vld [vmem:[%s272 + $0x4c] sm:$0xf]
                  %295 = vst [vmem:[%s273 + $0x28] sm:$0xf] %v294
                  %v296 = vld [vmem:[%s272 + $0x50] sm:$0xf]
                  %297 = vst [vmem:[%s273 + $0x2c] sm:$0xf] %v296
                $region71: #{conv_layer_forward.1} parent=58 // loop_footer
                  %s271 = sadd.s32 1, %s267
                $region72: #{conv_layer_forward.1} parent=58 // loop_footer_branch
                  %266 = sbr.rel target = $region68
                $region73: #{conv_layer_forward.1} parent=58 // loop_exit
                  _
              $region59: #{conv_layer_forward.1} parent=43 // pred_fallthru
                _
            $region44: #{conv_layer_forward.1} parent=39 // pred_fallthru
              _
            // Predicated region
            $region45: #{conv_layer_forward.1} parent=39 // pred_check
              _
            $region46: #{conv_layer_forward.1} parent=39 // pred_check_branch
              %221 = sbr.rel (0) target = $region48
            $region47: #{conv_layer_forward.1} parent=39 // pred_region
              loop: start=0, step=1, limit=1
              $region49: #{conv_layer_forward.1} parent=47 // loop_pre_header
                _
              $region50: #{conv_layer_forward.1} parent=47 // loop_header
                %s224 = sphi 0, %s228
                %p225 = scmp.ge.s32.totalorder %s224, 1
                %s229 = sphi %s215, %s215
                %s230 = sphi %s212, %s212
              $region51: #{conv_layer_forward.1} parent=47 // loop_header_branch
                %227 = sbr.rel (%p225) target = $region55
              $region52: #{conv_layer_forward.1} parent=47 // loop_body
                %v231 = vld [vmem:[%s229] sm:$0xf]
                %232 = vst [vmem:[%s230] sm:$0xf] %v231
                %v233 = vld [vmem:[%s229 + $0x4] sm:$0xf]
                %234 = vst [vmem:[%s230 + $0x4] sm:$0xf] %v233
                %v235 = vld [vmem:[%s229 + $0x8] sm:$0xf]
                %236 = vst [vmem:[%s230 + $0x8] sm:$0xf] %v235
                %v237 = vld [vmem:[%s229 + $0x18] sm:$0xf]
                %238 = vst [vmem:[%s230 + $0xc] sm:$0xf] %v237
                %v239 = vld [vmem:[%s229 + $0x1c] sm:$0xf]
                %240 = vst [vmem:[%s230 + $0x10] sm:$0xf] %v239
                %v241 = vld [vmem:[%s229 + $0x20] sm:$0xf]
                %242 = vst [vmem:[%s230 + $0x14] sm:$0xf] %v241
                %v243 = vld [vmem:[%s229 + $0x30] sm:$0xf]
                %244 = vst [vmem:[%s230 + $0x18] sm:$0xf] %v243
                %v245 = vld [vmem:[%s229 + $0x34] sm:$0xf]
                %246 = vst [vmem:[%s230 + $0x1c] sm:$0xf] %v245
                %v247 = vld [vmem:[%s229 + $0x38] sm:$0xf]
                %248 = vst [vmem:[%s230 + $0x20] sm:$0xf] %v247
                %v249 = vld [vmem:[%s229 + $0x48] sm:$0xf]
                %250 = vst [vmem:[%s230 + $0x24] sm:$0xf] %v249
                %v251 = vld [vmem:[%s229 + $0x4c] sm:$0xf]
                %252 = vst [vmem:[%s230 + $0x28] sm:$0xf] %v251
                %v253 = vld [vmem:[%s229 + $0x50] sm:$0xf]
                %254 = vst [vmem:[%s230 + $0x2c] sm:$0xf] %v253
              $region53: #{conv_layer_forward.1} parent=47 // loop_footer
                %s228 = sadd.s32 1, %s224
              $region54: #{conv_layer_forward.1} parent=47 // loop_footer_branch
                %223 = sbr.rel target = $region50
              $region55: #{conv_layer_forward.1} parent=47 // loop_exit
                _
            $region48: #{conv_layer_forward.1} parent=39 // pred_fallthru
              _
          $region40: #{conv_layer_forward.1} parent=35 // pred_fallthru
            _
          %298 = vnop
        $region36: #{conv_layer_forward.1} parent=31 // pred_fallthru
          _
      $region32: #{conv_layer_forward.1} parent=5 // pred_fallthru
        _
      %p299 = scmp.le.s32.totalorder 1, %s13
      %p300 = scmp.lt.s32.totalorder %s13, 3
      %p301 = pnand %p299, %p300
      %p302 = pneg %p301
      // Predicated region
      $region74: #{conv_layer_forward.1} parent=5 // pred_check
        _
      $region75: #{conv_layer_forward.1} parent=5 // pred_check_branch
        %304 = sbr.rel (%p301) target = $region77
      $region76: #{conv_layer_forward.1} parent=5 // pred_region
        %s305 = ssub.s32 %s13, 1
        %s306 = sand.u32 %s26, 1
        %s307 = sand.u32 %s26, 1
        %s308 = smul.addr %s307, 48
        %s309 = scalar_lea.vmem [#allocation2], %s308
        // Predicated region
        $region78: #{conv_layer_forward.1} parent=76 // pred_check
          %p310 = pneg %p39
        $region79: #{conv_layer_forward.1} parent=76 // pred_check_branch
          %312 = sbr.rel (%p310) target = $region81
        $region80: #{conv_layer_forward.1} parent=76 // pred_region
          _
        $region81: #{conv_layer_forward.1} parent=76 // pred_fallthru
          _
        %s313 = sand.u32 %s26, 1
        %s314 = sand.u32 %s26, 1
        %s315 = smul.addr %s314, 48
        %s316 = scalar_lea.vmem [#allocation2], %s315
        %p317 = pneg %p39
        %p318 = pneg %p36
        %p319 = pneg %p60
        %p320 = pneg %p57
        %p321 = pneg %p81
        %p322 = pneg %p78
        %p323 = pneg %p102
        %p324 = pneg %p99
        %p325 = pneg %p123
        %p326 = pneg %p120
        %p327 = pneg %p149
        %p328 = pneg %p146
        %p329 = scmp.lt.s32.totalorder %s18, 1
        %s330 = scalar_select %p329, %s18, 1
        %s331 = smul.addr %s330, 2
        %s332 = smul.addr %s331, 4
        %s333 = scalar_lea.vmem %s5, %s332
        %p334 = pneg %p175
        %p335 = pneg %p172
        %p336 = scmp.lt.s32.totalorder %s18, 1
        %s337 = scalar_select %p336, %s18, 1
        %s338 = smul.addr %s337, 2
        %s339 = smul.addr %s338, 4
        %s340 = scalar_lea.vmem %s6, %s339
        %p341 = scmp.lt.s32.totalorder %s18, 1
        %s342 = scalar_select %p341, %s18, 1
        %s343 = smul.addr %s342, 2
        %s344 = smul.addr %s343, 4
        %s345 = scalar_lea.vmem %s5, %s344
        %p346 = scmp.lt.s32.totalorder %s18, 1
        %s347 = scalar_select %p346, %s18, 1
        %s348 = smul.addr %s347, 2
        %s349 = smul.addr %s348, 4
        %s350 = scalar_lea.vmem %s6, %s349
        %v352 = vld [vmem:[%s309] sm:$0xf]
        %v353 = vld [vmem:[%s309 + $0x4] sm:$0xf]
        %v354 = vld [vmem:[%s309 + $0x8] sm:$0x1]
        %v355 = vld [vmem:[%s309 + $0xc] sm:$0xf]
        %v356 = vld [vmem:[%s309 + $0x10] sm:$0xf]
        %v357 = vld [vmem:[%s309 + $0x14] sm:$0x1]
        %v358 = vld [vmem:[%s309 + $0x18] sm:$0xf]
        %v359 = vld [vmem:[%s309 + $0x1c] sm:$0xf]
        %v360 = vld [vmem:[%s309 + $0x20] sm:$0x1]
        %v361 = vld [vmem:[%s309 + $0x24] sm:$0xf]
        %v362 = vld [vmem:[%s309 + $0x28] sm:$0xf]
        %v363 = vld [vmem:[%s309 + $0x2c] sm:$0x1]
        %v364 = vunpack.c.l.bf16 %v352
        %v365 = vunpack.c.l.bf16 %v353
        %v366 = vunpack.c.l.bf16 %v354
        %v367 = vunpack.c.l.bf16 %v355
        %v368 = vunpack.c.l.bf16 %v356
        %v369 = vunpack.c.l.bf16 %v357
        %v370 = vunpack.c.l.bf16 %v358
        %v371 = vunpack.c.l.bf16 %v359
        %v372 = vunpack.c.l.bf16 %v360
        %v373 = vunpack.c.l.bf16 %v361
        %v374 = vunpack.c.l.bf16 %v362
        %v375 = vunpack.c.l.bf16 %v363
        %v376 = vcombine.low %v364, %v370
        %v377 = vcombine.high %v364, %v370
        %v379 = vunpack.c.l.s4 1983009808
        %v380 = vunpack.c.0.s8 %v379
        %v381 = vlaneseq
        %v382 = vshrl.u32 %v381, 7
        %v383 = vsub.s32 %v380, %v382
        %v384 = vrot.slane %v376, %v383
        %v386 = vunpack.c.l.s4 1983009808
        %v387 = vunpack.c.0.s8 %v386
        %v388 = vlaneseq
        %v389 = vshrl.u32 %v388, 7
        %v390 = vsub.s32 %v387, %v389
        %v391 = vrot.slane %v377, %v390
        %v392 = vcombine.low %v367, %v373
        %v393 = vcombine.high %v367, %v373
        %v395 = vunpack.c.l.s4 1983009808
        %v396 = vunpack.c.0.s8 %v395
        %v397 = vlaneseq
        %v398 = vshrl.u32 %v397, 7
        %v399 = vsub.s32 %v396, %v398
        %v400 = vrot.slane %v392, %v399
        %v402 = vunpack.c.l.s4 1983009808
        %v403 = vunpack.c.0.s8 %v402
        %v404 = vlaneseq
        %v405 = vshrl.u32 %v404, 7
        %v406 = vsub.s32 %v403, %v405
        %v407 = vrot.slane %v393, %v406
        %v408 = vcombine.low %v384, %v400
        %v409 = vcombine.high %v384, %v400
        %v411 = vunpack.c.l.s4 1934713408
        %v412 = vunpack.c.0.s8 %v411
        %v413 = vlaneseq
        %v414 = vshrl.u32 %v413, 7
        %v415 = vsub.s32 %v412, %v414
        %v416 = vrot.slane %v408, %v415
        %v418 = vunpack.c.l.s4 1934713408
        %v419 = vunpack.c.0.s8 %v418
        %v420 = vlaneseq
        %v421 = vshrl.u32 %v420, 7
        %v422 = vsub.s32 %v419, %v421
        %v423 = vrot.slane %v409, %v422
        %v424 = vcombine.low %v391, %v407
        %v425 = vcombine.high %v391, %v407
        %v427 = vunpack.c.l.s4 1934713408
        %v428 = vunpack.c.0.s8 %v427
        %v429 = vlaneseq
        %v430 = vshrl.u32 %v429, 7
        %v431 = vsub.s32 %v428, %v430
        %v432 = vrot.slane %v424, %v431
        %v434 = vunpack.c.l.s4 1934713408
        %v435 = vunpack.c.0.s8 %v434
        %v436 = vlaneseq
        %v437 = vshrl.u32 %v436, 7
        %v438 = vsub.s32 %v435, %v437
        %v439 = vrot.slane %v425, %v438
        %v440 = vcombine.high %v416, 0.0
        %v441 = vcombine.high %v423, 0.0
        %v442 = vcombine.high %v432, 0.0
        %v443 = vcombine.high %v439, 0.0
        %v444 = vcombine.low %v365, %v371
        %v445 = vcombine.high %v365, %v371
        %v447 = vunpack.c.l.s4 1983009808
        %v448 = vunpack.c.0.s8 %v447
        %v449 = vlaneseq
        %v450 = vshrl.u32 %v449, 7
        %v451 = vsub.s32 %v448, %v450
        %v452 = vrot.slane %v444, %v451
        %v454 = vunpack.c.l.s4 1983009808
        %v455 = vunpack.c.0.s8 %v454
        %v456 = vlaneseq
        %v457 = vshrl.u32 %v456, 7
        %v458 = vsub.s32 %v455, %v457
        %v459 = vrot.slane %v445, %v458
        %v460 = vcombine.low %v368, %v374
        %v461 = vcombine.high %v368, %v374
        %v463 = vunpack.c.l.s4 1983009808
        %v464 = vunpack.c.0.s8 %v463
        %v465 = vlaneseq
        %v466 = vshrl.u32 %v465, 7
        %v467 = vsub.s32 %v464, %v466
        %v468 = vrot.slane %v460, %v467
        %v470 = vunpack.c.l.s4 1983009808
        %v471 = vunpack.c.0.s8 %v470
        %v472 = vlaneseq
        %v473 = vshrl.u32 %v472, 7
        %v474 = vsub.s32 %v471, %v473
        %v475 = vrot.slane %v461, %v474
        %v476 = vcombine.low %v452, %v468
        %v477 = vcombine.high %v452, %v468
        %v479 = vunpack.c.l.s4 1934713408
        %v480 = vunpack.c.0.s8 %v479
        %v481 = vlaneseq
        %v482 = vshrl.u32 %v481, 7
        %v483 = vsub.s32 %v480, %v482
        %v484 = vrot.slane %v476, %v483
        %v486 = vunpack.c.l.s4 1934713408
        %v487 = vunpack.c.0.s8 %v486
        %v488 = vlaneseq
        %v489 = vshrl.u32 %v488, 7
        %v490 = vsub.s32 %v487, %v489
        %v491 = vrot.slane %v477, %v490
        %v492 = vcombine.low %v459, %v475
        %v493 = vcombine.high %v459, %v475
        %v495 = vunpack.c.l.s4 1934713408
        %v496 = vunpack.c.0.s8 %v495
        %v497 = vlaneseq
        %v498 = vshrl.u32 %v497, 7
        %v499 = vsub.s32 %v496, %v498
        %v500 = vrot.slane %v492, %v499
        %v502 = vunpack.c.l.s4 1934713408
        %v503 = vunpack.c.0.s8 %v502
        %v504 = vlaneseq
        %v505 = vshrl.u32 %v504, 7
        %v506 = vsub.s32 %v503, %v505
        %v507 = vrot.slane %v493, %v506
        %v508 = vcombine.high %v484, 0.0
        %v509 = vcombine.high %v491, 0.0
        %v510 = vcombine.high %v500, 0.0
        %v511 = vcombine.high %v507, 0.0
        %513 = vrot.lane.b32.xlu0 %v440, 16
        %v514 = vpop.permute.xlu0 %513
        %517 = vrot.lane.b32.xlu0 %v423, 32
        %v518 = vpop.permute.xlu0 %517
        %521 = vrot.lane.b32.xlu0 %v441, 48
        %v522 = vpop.permute.xlu0 %521
        %525 = vrot.lane.b32.xlu0 %v432, 64
        %v526 = vpop.permute.xlu0 %525
        %529 = vrot.lane.b32.xlu0 %v442, 80
        %v530 = vpop.permute.xlu0 %529
        %533 = vrot.lane.b32.xlu0 %v439, 96
        %v534 = vpop.permute.xlu0 %533
        %537 = vrot.lane.b32.xlu0 %v443, 112
        %v538 = vpop.permute.xlu0 %537
        %541 = vrot.lane.b32.xlu0 %v508, 16
        %v542 = vpop.permute.xlu0 %541
        %545 = vrot.lane.b32.xlu0 %v491, 32
        %v546 = vpop.permute.xlu0 %545
        %549 = vrot.lane.b32.xlu0 %v509, 48
        %v550 = vpop.permute.xlu0 %549
        %553 = vrot.lane.b32.xlu0 %v500, 64
        %v554 = vpop.permute.xlu0 %553
        %557 = vrot.lane.b32.xlu0 %v510, 80
        %v558 = vpop.permute.xlu0 %557
        %561 = vrot.lane.b32.xlu0 %v507, 96
        %v562 = vpop.permute.xlu0 %561
        %565 = vrot.lane.b32.xlu0 %v511, 112
        %v566 = vpop.permute.xlu0 %565
        %vm568 = vcmask 130048
        %v569 = vsel %vm568, %v416, %v514
        %vm570 = vcmask 261120
        %v571 = vsel %vm570, %v569, %v518
        %vm572 = vcmask 392192
        %v573 = vsel %vm572, %v571, %v522
        %vm574 = vcmask 523264
        %v575 = vsel %vm574, %v573, %v526
        %vm576 = vcmask 654336
        %v577 = vsel %vm576, %v575, %v530
        %vm578 = vcmask 785408
        %v579 = vsel %vm578, %v577, %v534
        %vm580 = vcmask 916480
        %v581 = vsel %vm580, %v579, %v538
        %v582 = vsel %vm568, %v484, %v542
        %v583 = vsel %vm570, %v582, %v546
        %v584 = vsel %vm572, %v583, %v550
        %v585 = vsel %vm574, %v584, %v554
        %v586 = vsel %vm576, %v585, %v558
        %v587 = vsel %vm578, %v586, %v562
        %v588 = vsel %vm580, %v587, %v566
        %597 = vrot.lane.b32.xlu0 %v364, 127
        %v598 = vpop.permute.xlu0 %597
        %599 = vrot.lane.b32.xlu0 %v365, 127
        %v600 = vpop.permute.xlu0 %599
        %601 = vrot.lane.b32.xlu0 %v367, 127
        %v602 = vpop.permute.xlu0 %601
        %603 = vrot.lane.b32.xlu0 %v368, 127
        %v604 = vpop.permute.xlu0 %603
        %605 = vrot.lane.b32.xlu0 %v370, 127
        %v606 = vpop.permute.xlu0 %605
        %607 = vrot.lane.b32.xlu0 %v371, 127
        %v608 = vpop.permute.xlu0 %607
        %609 = vrot.lane.b32.xlu0 %v373, 127
        %v610 = vpop.permute.xlu0 %609
        %611 = vrot.lane.b32.xlu0 %v374, 127
        %v612 = vpop.permute.xlu0 %611
        %v621 = vcombine.low %v598, %v606
        %v622 = vcombine.high %v598, %v606
        %v624 = vunpack.c.l.s4 1983009808
        %v625 = vunpack.c.0.s8 %v624
        %v626 = vlaneseq
        %v627 = vshrl.u32 %v626, 7
        %v628 = vsub.s32 %v625, %v627
        %v629 = vrot.slane %v621, %v628
        %v631 = vunpack.c.l.s4 1983009808
        %v632 = vunpack.c.0.s8 %v631
        %v633 = vlaneseq
        %v634 = vshrl.u32 %v633, 7
        %v635 = vsub.s32 %v632, %v634
        %v636 = vrot.slane %v622, %v635
        %v637 = vcombine.low %v602, %v610
        %v638 = vcombine.high %v602, %v610
        %v640 = vunpack.c.l.s4 1983009808
        %v641 = vunpack.c.0.s8 %v640
        %v642 = vlaneseq
        %v643 = vshrl.u32 %v642, 7
        %v644 = vsub.s32 %v641, %v643
        %v645 = vrot.slane %v637, %v644
        %v647 = vunpack.c.l.s4 1983009808
        %v648 = vunpack.c.0.s8 %v647
        %v649 = vlaneseq
        %v650 = vshrl.u32 %v649, 7
        %v651 = vsub.s32 %v648, %v650
        %v652 = vrot.slane %v638, %v651
        %v653 = vcombine.low %v629, %v645
        %v654 = vcombine.high %v629, %v645
        %v656 = vunpack.c.l.s4 1934713408
        %v657 = vunpack.c.0.s8 %v656
        %v658 = vlaneseq
        %v659 = vshrl.u32 %v658, 7
        %v660 = vsub.s32 %v657, %v659
        %v661 = vrot.slane %v653, %v660
        %v663 = vunpack.c.l.s4 1934713408
        %v664 = vunpack.c.0.s8 %v663
        %v665 = vlaneseq
        %v666 = vshrl.u32 %v665, 7
        %v667 = vsub.s32 %v664, %v666
        %v668 = vrot.slane %v654, %v667
        %v669 = vcombine.low %v636, %v652
        %v670 = vcombine.high %v636, %v652
        %v672 = vunpack.c.l.s4 1934713408
        %v673 = vunpack.c.0.s8 %v672
        %v674 = vlaneseq
        %v675 = vshrl.u32 %v674, 7
        %v676 = vsub.s32 %v673, %v675
        %v677 = vrot.slane %v669, %v676
        %v679 = vunpack.c.l.s4 1934713408
        %v680 = vunpack.c.0.s8 %v679
        %v681 = vlaneseq
        %v682 = vshrl.u32 %v681, 7
        %v683 = vsub.s32 %v680, %v682
        %v684 = vrot.slane %v670, %v683
        %v685 = vcombine.high %v661, 0.0
        %v686 = vcombine.high %v668, 0.0
        %v687 = vcombine.high %v677, 0.0
        %v688 = vcombine.high %v684, 0.0
        %v689 = vcombine.low %v600, %v608
        %v690 = vcombine.high %v600, %v608
        %v692 = vunpack.c.l.s4 1983009808
        %v693 = vunpack.c.0.s8 %v692
        %v694 = vlaneseq
        %v695 = vshrl.u32 %v694, 7
        %v696 = vsub.s32 %v693, %v695
        %v697 = vrot.slane %v689, %v696
        %v699 = vunpack.c.l.s4 1983009808
        %v700 = vunpack.c.0.s8 %v699
        %v701 = vlaneseq
        %v702 = vshrl.u32 %v701, 7
        %v703 = vsub.s32 %v700, %v702
        %v704 = vrot.slane %v690, %v703
        %v705 = vcombine.low %v604, %v612
        %v706 = vcombine.high %v604, %v612
        %v708 = vunpack.c.l.s4 1983009808
        %v709 = vunpack.c.0.s8 %v708
        %v710 = vlaneseq
        %v711 = vshrl.u32 %v710, 7
        %v712 = vsub.s32 %v709, %v711
        %v713 = vrot.slane %v705, %v712
        %v715 = vunpack.c.l.s4 1983009808
        %v716 = vunpack.c.0.s8 %v715
        %v717 = vlaneseq
        %v718 = vshrl.u32 %v717, 7
        %v719 = vsub.s32 %v716, %v718
        %v720 = vrot.slane %v706, %v719
        %v721 = vcombine.low %v697, %v713
        %v722 = vcombine.high %v697, %v713
        %v724 = vunpack.c.l.s4 1934713408
        %v725 = vunpack.c.0.s8 %v724
        %v726 = vlaneseq
        %v727 = vshrl.u32 %v726, 7
        %v728 = vsub.s32 %v725, %v727
        %v729 = vrot.slane %v721, %v728
        %v731 = vunpack.c.l.s4 1934713408
        %v732 = vunpack.c.0.s8 %v731
        %v733 = vlaneseq
        %v734 = vshrl.u32 %v733, 7
        %v735 = vsub.s32 %v732, %v734
        %v736 = vrot.slane %v722, %v735
        %v737 = vcombine.low %v704, %v720
        %v738 = vcombine.high %v704, %v720
        %v740 = vunpack.c.l.s4 1934713408
        %v741 = vunpack.c.0.s8 %v740
        %v742 = vlaneseq
        %v743 = vshrl.u32 %v742, 7
        %v744 = vsub.s32 %v741, %v743
        %v745 = vrot.slane %v737, %v744
        %v747 = vunpack.c.l.s4 1934713408
        %v748 = vunpack.c.0.s8 %v747
        %v749 = vlaneseq
        %v750 = vshrl.u32 %v749, 7
        %v751 = vsub.s32 %v748, %v750
        %v752 = vrot.slane %v738, %v751
        %v753 = vcombine.high %v729, 0.0
        %v754 = vcombine.high %v736, 0.0
        %v755 = vcombine.high %v745, 0.0
        %v756 = vcombine.high %v752, 0.0
        %758 = vrot.lane.b32.xlu0 %v685, 16
        %v759 = vpop.permute.xlu0 %758
        %762 = vrot.lane.b32.xlu0 %v668, 32
        %v763 = vpop.permute.xlu0 %762
        %766 = vrot.lane.b32.xlu0 %v686, 48
        %v767 = vpop.permute.xlu0 %766
        %770 = vrot.lane.b32.xlu0 %v677, 64
        %v771 = vpop.permute.xlu0 %770
        %774 = vrot.lane.b32.xlu0 %v687, 80
        %v775 = vpop.permute.xlu0 %774
        %778 = vrot.lane.b32.xlu0 %v684, 96
        %v779 = vpop.permute.xlu0 %778
        %782 = vrot.lane.b32.xlu0 %v688, 112
        %v783 = vpop.permute.xlu0 %782
        %786 = vrot.lane.b32.xlu0 %v753, 16
        %v787 = vpop.permute.xlu0 %786
        %790 = vrot.lane.b32.xlu0 %v736, 32
        %v791 = vpop.permute.xlu0 %790
        %794 = vrot.lane.b32.xlu0 %v754, 48
        %v795 = vpop.permute.xlu0 %794
        %798 = vrot.lane.b32.xlu0 %v745, 64
        %v799 = vpop.permute.xlu0 %798
        %802 = vrot.lane.b32.xlu0 %v755, 80
        %v803 = vpop.permute.xlu0 %802
        %806 = vrot.lane.b32.xlu0 %v752, 96
        %v807 = vpop.permute.xlu0 %806
        %810 = vrot.lane.b32.xlu0 %v756, 112
        %v811 = vpop.permute.xlu0 %810
        %v813 = vsel %vm568, %v661, %v759
        %v814 = vsel %vm570, %v813, %v763
        %v815 = vsel %vm572, %v814, %v767
        %v816 = vsel %vm574, %v815, %v771
        %v817 = vsel %vm576, %v816, %v775
        %v818 = vsel %vm578, %v817, %v779
        %v819 = vsel %vm580, %v818, %v783
        %v820 = vsel %vm568, %v729, %v787
        %v821 = vsel %vm570, %v820, %v791
        %v822 = vsel %vm572, %v821, %v795
        %v823 = vsel %vm574, %v822, %v799
        %v824 = vsel %vm576, %v823, %v803
        %v825 = vsel %vm578, %v824, %v807
        %v826 = vsel %vm580, %v825, %v811
        %827 = vrot.lane.b32.xlu0 %v364, 126
        %v828 = vpop.permute.xlu0 %827
        %829 = vrot.lane.b32.xlu0 %v365, 126
        %v830 = vpop.permute.xlu0 %829
        %831 = vrot.lane.b32.xlu0 %v367, 126
        %v832 = vpop.permute.xlu0 %831
        %833 = vrot.lane.b32.xlu0 %v368, 126
        %v834 = vpop.permute.xlu0 %833
        %835 = vrot.lane.b32.xlu0 %v370, 126
        %v836 = vpop.permute.xlu0 %835
        %837 = vrot.lane.b32.xlu0 %v371, 126
        %v838 = vpop.permute.xlu0 %837
        %839 = vrot.lane.b32.xlu0 %v373, 126
        %v840 = vpop.permute.xlu0 %839
        %841 = vrot.lane.b32.xlu0 %v374, 126
        %v842 = vpop.permute.xlu0 %841
        %v851 = vcombine.low %v828, %v836
        %v852 = vcombine.high %v828, %v836
        %v854 = vunpack.c.l.s4 1983009808
        %v855 = vunpack.c.0.s8 %v854
        %v856 = vlaneseq
        %v857 = vshrl.u32 %v856, 7
        %v858 = vsub.s32 %v855, %v857
        %v859 = vrot.slane %v851, %v858
        %v861 = vunpack.c.l.s4 1983009808
        %v862 = vunpack.c.0.s8 %v861
        %v863 = vlaneseq
        %v864 = vshrl.u32 %v863, 7
        %v865 = vsub.s32 %v862, %v864
        %v866 = vrot.slane %v852, %v865
        %v867 = vcombine.low %v832, %v840
        %v868 = vcombine.high %v832, %v840
        %v870 = vunpack.c.l.s4 1983009808
        %v871 = vunpack.c.0.s8 %v870
        %v872 = vlaneseq
        %v873 = vshrl.u32 %v872, 7
        %v874 = vsub.s32 %v871, %v873
        %v875 = vrot.slane %v867, %v874
        %v877 = vunpack.c.l.s4 1983009808
        %v878 = vunpack.c.0.s8 %v877
        %v879 = vlaneseq
        %v880 = vshrl.u32 %v879, 7
        %v881 = vsub.s32 %v878, %v880
        %v882 = vrot.slane %v868, %v881
        %v883 = vcombine.low %v859, %v875
        %v884 = vcombine.high %v859, %v875
        %v886 = vunpack.c.l.s4 1934713408
        %v887 = vunpack.c.0.s8 %v886
        %v888 = vlaneseq
        %v889 = vshrl.u32 %v888, 7
        %v890 = vsub.s32 %v887, %v889
        %v891 = vrot.slane %v883, %v890
        %v893 = vunpack.c.l.s4 1934713408
        %v894 = vunpack.c.0.s8 %v893
        %v895 = vlaneseq
        %v896 = vshrl.u32 %v895, 7
        %v897 = vsub.s32 %v894, %v896
        %v898 = vrot.slane %v884, %v897
        %v899 = vcombine.low %v866, %v882
        %v900 = vcombine.high %v866, %v882
        %v902 = vunpack.c.l.s4 1934713408
        %v903 = vunpack.c.0.s8 %v902
        %v904 = vlaneseq
        %v905 = vshrl.u32 %v904, 7
        %v906 = vsub.s32 %v903, %v905
        %v907 = vrot.slane %v899, %v906
        %v909 = vunpack.c.l.s4 1934713408
        %v910 = vunpack.c.0.s8 %v909
        %v911 = vlaneseq
        %v912 = vshrl.u32 %v911, 7
        %v913 = vsub.s32 %v910, %v912
        %v914 = vrot.slane %v900, %v913
        %v915 = vcombine.high %v891, 0.0
        %v916 = vcombine.high %v898, 0.0
        %v917 = vcombine.high %v907, 0.0
        %v918 = vcombine.high %v914, 0.0
        %v919 = vcombine.low %v830, %v838
        %v920 = vcombine.high %v830, %v838
        %v922 = vunpack.c.l.s4 1983009808
        %v923 = vunpack.c.0.s8 %v922
        %v924 = vlaneseq
        %v925 = vshrl.u32 %v924, 7
        %v926 = vsub.s32 %v923, %v925
        %v927 = vrot.slane %v919, %v926
        %v929 = vunpack.c.l.s4 1983009808
        %v930 = vunpack.c.0.s8 %v929
        %v931 = vlaneseq
        %v932 = vshrl.u32 %v931, 7
        %v933 = vsub.s32 %v930, %v932
        %v934 = vrot.slane %v920, %v933
        %v935 = vcombine.low %v834, %v842
        %v936 = vcombine.high %v834, %v842
        %v938 = vunpack.c.l.s4 1983009808
        %v939 = vunpack.c.0.s8 %v938
        %v940 = vlaneseq
        %v941 = vshrl.u32 %v940, 7
        %v942 = vsub.s32 %v939, %v941
        %v943 = vrot.slane %v935, %v942
        %v945 = vunpack.c.l.s4 1983009808
        %v946 = vunpack.c.0.s8 %v945
        %v947 = vlaneseq
        %v948 = vshrl.u32 %v947, 7
        %v949 = vsub.s32 %v946, %v948
        %v950 = vrot.slane %v936, %v949
        %v951 = vcombine.low %v927, %v943
        %v952 = vcombine.high %v927, %v943
        %v954 = vunpack.c.l.s4 1934713408
        %v955 = vunpack.c.0.s8 %v954
        %v956 = vlaneseq
        %v957 = vshrl.u32 %v956, 7
        %v958 = vsub.s32 %v955, %v957
        %v959 = vrot.slane %v951, %v958
        %v961 = vunpack.c.l.s4 1934713408
        %v962 = vunpack.c.0.s8 %v961
        %v963 = vlaneseq
        %v964 = vshrl.u32 %v963, 7
        %v965 = vsub.s32 %v962, %v964
        %v966 = vrot.slane %v952, %v965
        %v967 = vcombine.low %v934, %v950
        %v968 = vcombine.high %v934, %v950
        %v970 = vunpack.c.l.s4 1934713408
        %v971 = vunpack.c.0.s8 %v970
        %v972 = vlaneseq
        %v973 = vshrl.u32 %v972, 7
        %v974 = vsub.s32 %v971, %v973
        %v975 = vrot.slane %v967, %v974
        %v977 = vunpack.c.l.s4 1934713408
        %v978 = vunpack.c.0.s8 %v977
        %v979 = vlaneseq
        %v980 = vshrl.u32 %v979, 7
        %v981 = vsub.s32 %v978, %v980
        %v982 = vrot.slane %v968, %v981
        %v983 = vcombine.high %v959, 0.0
        %v984 = vcombine.high %v966, 0.0
        %v985 = vcombine.high %v975, 0.0
        %v986 = vcombine.high %v982, 0.0
        %988 = vrot.lane.b32.xlu0 %v915, 16
        %v989 = vpop.permute.xlu0 %988
        %992 = vrot.lane.b32.xlu0 %v898, 32
        %v993 = vpop.permute.xlu0 %992
        %996 = vrot.lane.b32.xlu0 %v916, 48
        %v997 = vpop.permute.xlu0 %996
        %1000 = vrot.lane.b32.xlu0 %v907, 64
        %v1001 = vpop.permute.xlu0 %1000
        %1004 = vrot.lane.b32.xlu0 %v917, 80
        %v1005 = vpop.permute.xlu0 %1004
        %1008 = vrot.lane.b32.xlu0 %v914, 96
        %v1009 = vpop.permute.xlu0 %1008
        %1012 = vrot.lane.b32.xlu0 %v918, 112
        %v1013 = vpop.permute.xlu0 %1012
        %1016 = vrot.lane.b32.xlu0 %v983, 16
        %v1017 = vpop.permute.xlu0 %1016
        %1020 = vrot.lane.b32.xlu0 %v966, 32
        %v1021 = vpop.permute.xlu0 %1020
        %1024 = vrot.lane.b32.xlu0 %v984, 48
        %v1025 = vpop.permute.xlu0 %1024
        %1028 = vrot.lane.b32.xlu0 %v975, 64
        %v1029 = vpop.permute.xlu0 %1028
        %1032 = vrot.lane.b32.xlu0 %v985, 80
        %v1033 = vpop.permute.xlu0 %1032
        %1036 = vrot.lane.b32.xlu0 %v982, 96
        %v1037 = vpop.permute.xlu0 %1036
        %1040 = vrot.lane.b32.xlu0 %v986, 112
        %v1041 = vpop.permute.xlu0 %1040
        %v1043 = vsel %vm568, %v891, %v989
        %v1044 = vsel %vm570, %v1043, %v993
        %v1045 = vsel %vm572, %v1044, %v997
        %v1046 = vsel %vm574, %v1045, %v1001
        %v1047 = vsel %vm576, %v1046, %v1005
        %v1048 = vsel %vm578, %v1047, %v1009
        %v1049 = vsel %vm580, %v1048, %v1013
        %v1050 = vsel %vm568, %v959, %v1017
        %v1051 = vsel %vm570, %v1050, %v1021
        %v1052 = vsel %vm572, %v1051, %v1025
        %v1053 = vsel %vm574, %v1052, %v1029
        %v1054 = vsel %vm576, %v1053, %v1033
        %v1055 = vsel %vm578, %v1054, %v1037
        %v1056 = vsel %vm580, %v1055, %v1041
        %vm1061 = vcmask 1046528
        %v1062 = vrot.slane %v364, 1
        %v1063 = vrot.slane %v365, 1
        %v1064 = vsel %vm1061, %v1062, %v1063
        %v1065 = vrot.slane %v366, 1
        %v1066 = vsel %vm1061, %v1063, %v1065
        %v1067 = vrot.slane %v367, 1
        %v1068 = vrot.slane %v368, 1
        %v1069 = vsel %vm1061, %v1067, %v1068
        %v1070 = vrot.slane %v369, 1
        %v1071 = vsel %vm1061, %v1068, %v1070
        %v1072 = vrot.slane %v370, 1
        %v1073 = vrot.slane %v371, 1
        %v1074 = vsel %vm1061, %v1072, %v1073
        %v1075 = vrot.slane %v372, 1
        %v1076 = vsel %vm1061, %v1073, %v1075
        %v1077 = vrot.slane %v373, 1
        %v1078 = vrot.slane %v374, 1
        %v1079 = vsel %vm1061, %v1077, %v1078
        %v1080 = vrot.slane %v375, 1
        %v1081 = vsel %vm1061, %v1078, %v1080
        %v1090 = vcombine.low %v1064, %v1074
        %v1091 = vcombine.high %v1064, %v1074
        %v1093 = vunpack.c.l.s4 1983009808
        %v1094 = vunpack.c.0.s8 %v1093
        %v1095 = vlaneseq
        %v1096 = vshrl.u32 %v1095, 7
        %v1097 = vsub.s32 %v1094, %v1096
        %v1098 = vrot.slane %v1090, %v1097
        %v1100 = vunpack.c.l.s4 1983009808
        %v1101 = vunpack.c.0.s8 %v1100
        %v1102 = vlaneseq
        %v1103 = vshrl.u32 %v1102, 7
        %v1104 = vsub.s32 %v1101, %v1103
        %v1105 = vrot.slane %v1091, %v1104
        %v1106 = vcombine.low %v1069, %v1079
        %v1107 = vcombine.high %v1069, %v1079
        %v1109 = vunpack.c.l.s4 1983009808
        %v1110 = vunpack.c.0.s8 %v1109
        %v1111 = vlaneseq
        %v1112 = vshrl.u32 %v1111, 7
        %v1113 = vsub.s32 %v1110, %v1112
        %v1114 = vrot.slane %v1106, %v1113
        %v1116 = vunpack.c.l.s4 1983009808
        %v1117 = vunpack.c.0.s8 %v1116
        %v1118 = vlaneseq
        %v1119 = vshrl.u32 %v1118, 7
        %v1120 = vsub.s32 %v1117, %v1119
        %v1121 = vrot.slane %v1107, %v1120
        %v1122 = vcombine.low %v1098, %v1114
        %v1123 = vcombine.high %v1098, %v1114
        %v1125 = vunpack.c.l.s4 1934713408
        %v1126 = vunpack.c.0.s8 %v1125
        %v1127 = vlaneseq
        %v1128 = vshrl.u32 %v1127, 7
        %v1129 = vsub.s32 %v1126, %v1128
        %v1130 = vrot.slane %v1122, %v1129
        %v1132 = vunpack.c.l.s4 1934713408
        %v1133 = vunpack.c.0.s8 %v1132
        %v1134 = vlaneseq
        %v1135 = vshrl.u32 %v1134, 7
        %v1136 = vsub.s32 %v1133, %v1135
        %v1137 = vrot.slane %v1123, %v1136
        %v1138 = vcombine.low %v1105, %v1121
        %v1139 = vcombine.high %v1105, %v1121
        %v1141 = vunpack.c.l.s4 1934713408
        %v1142 = vunpack.c.0.s8 %v1141
        %v1143 = vlaneseq
        %v1144 = vshrl.u32 %v1143, 7
        %v1145 = vsub.s32 %v1142, %v1144
        %v1146 = vrot.slane %v1138, %v1145
        %v1148 = vunpack.c.l.s4 1934713408
        %v1149 = vunpack.c.0.s8 %v1148
        %v1150 = vlaneseq
        %v1151 = vshrl.u32 %v1150, 7
        %v1152 = vsub.s32 %v1149, %v1151
        %v1153 = vrot.slane %v1139, %v1152
        %v1154 = vcombine.high %v1130, 0.0
        %v1155 = vcombine.high %v1137, 0.0
        %v1156 = vcombine.high %v1146, 0.0
        %v1157 = vcombine.high %v1153, 0.0
        %v1158 = vcombine.low %v1066, %v1076
        %v1159 = vcombine.high %v1066, %v1076
        %v1161 = vunpack.c.l.s4 1983009808
        %v1162 = vunpack.c.0.s8 %v1161
        %v1163 = vlaneseq
        %v1164 = vshrl.u32 %v1163, 7
        %v1165 = vsub.s32 %v1162, %v1164
        %v1166 = vrot.slane %v1158, %v1165
        %v1168 = vunpack.c.l.s4 1983009808
        %v1169 = vunpack.c.0.s8 %v1168
        %v1170 = vlaneseq
        %v1171 = vshrl.u32 %v1170, 7
        %v1172 = vsub.s32 %v1169, %v1171
        %v1173 = vrot.slane %v1159, %v1172
        %v1174 = vcombine.low %v1071, %v1081
        %v1175 = vcombine.high %v1071, %v1081
        %v1177 = vunpack.c.l.s4 1983009808
        %v1178 = vunpack.c.0.s8 %v1177
        %v1179 = vlaneseq
        %v1180 = vshrl.u32 %v1179, 7
        %v1181 = vsub.s32 %v1178, %v1180
        %v1182 = vrot.slane %v1174, %v1181
        %v1184 = vunpack.c.l.s4 1983009808
        %v1185 = vunpack.c.0.s8 %v1184
        %v1186 = vlaneseq
        %v1187 = vshrl.u32 %v1186, 7
        %v1188 = vsub.s32 %v1185, %v1187
        %v1189 = vrot.slane %v1175, %v1188
        %v1190 = vcombine.low %v1166, %v1182
        %v1191 = vcombine.high %v1166, %v1182
        %v1193 = vunpack.c.l.s4 1934713408
        %v1194 = vunpack.c.0.s8 %v1193
        %v1195 = vlaneseq
        %v1196 = vshrl.u32 %v1195, 7
        %v1197 = vsub.s32 %v1194, %v1196
        %v1198 = vrot.slane %v1190, %v1197
        %v1200 = vunpack.c.l.s4 1934713408
        %v1201 = vunpack.c.0.s8 %v1200
        %v1202 = vlaneseq
        %v1203 = vshrl.u32 %v1202, 7
        %v1204 = vsub.s32 %v1201, %v1203
        %v1205 = vrot.slane %v1191, %v1204
        %v1206 = vcombine.low %v1173, %v1189
        %v1207 = vcombine.high %v1173, %v1189
        %v1209 = vunpack.c.l.s4 1934713408
        %v1210 = vunpack.c.0.s8 %v1209
        %v1211 = vlaneseq
        %v1212 = vshrl.u32 %v1211, 7
        %v1213 = vsub.s32 %v1210, %v1212
        %v1214 = vrot.slane %v1206, %v1213
        %v1216 = vunpack.c.l.s4 1934713408
        %v1217 = vunpack.c.0.s8 %v1216
        %v1218 = vlaneseq
        %v1219 = vshrl.u32 %v1218, 7
        %v1220 = vsub.s32 %v1217, %v1219
        %v1221 = vrot.slane %v1207, %v1220
        %v1222 = vcombine.high %v1198, 0.0
        %v1223 = vcombine.high %v1205, 0.0
        %v1224 = vcombine.high %v1214, 0.0
        %v1225 = vcombine.high %v1221, 0.0
        %1227 = vrot.lane.b32.xlu0 %v1154, 16
        %v1228 = vpop.permute.xlu0 %1227
        %1231 = vrot.lane.b32.xlu0 %v1137, 32
        %v1232 = vpop.permute.xlu0 %1231
        %1235 = vrot.lane.b32.xlu0 %v1155, 48
        %v1236 = vpop.permute.xlu0 %1235
        %1239 = vrot.lane.b32.xlu0 %v1146, 64
        %v1240 = vpop.permute.xlu0 %1239
        %1243 = vrot.lane.b32.xlu0 %v1156, 80
        %v1244 = vpop.permute.xlu0 %1243
        %1247 = vrot.lane.b32.xlu0 %v1153, 96
        %v1248 = vpop.permute.xlu0 %1247
        %1251 = vrot.lane.b32.xlu0 %v1157, 112
        %v1252 = vpop.permute.xlu0 %1251
        %1255 = vrot.lane.b32.xlu0 %v1222, 16
        %v1256 = vpop.permute.xlu0 %1255
        %1259 = vrot.lane.b32.xlu0 %v1205, 32
        %v1260 = vpop.permute.xlu0 %1259
        %1263 = vrot.lane.b32.xlu0 %v1223, 48
        %v1264 = vpop.permute.xlu0 %1263
        %1267 = vrot.lane.b32.xlu0 %v1214, 64
        %v1268 = vpop.permute.xlu0 %1267
        %1271 = vrot.lane.b32.xlu0 %v1224, 80
        %v1272 = vpop.permute.xlu0 %1271
        %1275 = vrot.lane.b32.xlu0 %v1221, 96
        %v1276 = vpop.permute.xlu0 %1275
        %1279 = vrot.lane.b32.xlu0 %v1225, 112
        %v1280 = vpop.permute.xlu0 %1279
        %v1282 = vsel %vm568, %v1130, %v1228
        %v1283 = vsel %vm570, %v1282, %v1232
        %v1284 = vsel %vm572, %v1283, %v1236
        %v1285 = vsel %vm574, %v1284, %v1240
        %v1286 = vsel %vm576, %v1285, %v1244
        %v1287 = vsel %vm578, %v1286, %v1248
        %v1288 = vsel %vm580, %v1287, %v1252
        %v1289 = vsel %vm568, %v1198, %v1256
        %v1290 = vsel %vm570, %v1289, %v1260
        %v1291 = vsel %vm572, %v1290, %v1264
        %v1292 = vsel %vm574, %v1291, %v1268
        %v1293 = vsel %vm576, %v1292, %v1272
        %v1294 = vsel %vm578, %v1293, %v1276
        %v1295 = vsel %vm580, %v1294, %v1280
        %1296 = vrot.lane.b32.xlu0 %v1064, 127
        %v1297 = vpop.permute.xlu0 %1296
        %1298 = vrot.lane.b32.xlu0 %v1066, 127
        %v1299 = vpop.permute.xlu0 %1298
        %1300 = vrot.lane.b32.xlu0 %v1069, 127
        %v1301 = vpop.permute.xlu0 %1300
        %1302 = vrot.lane.b32.xlu0 %v1071, 127
        %v1303 = vpop.permute.xlu0 %1302
        %1304 = vrot.lane.b32.xlu0 %v1074, 127
        %v1305 = vpop.permute.xlu0 %1304
        %1306 = vrot.lane.b32.xlu0 %v1076, 127
        %v1307 = vpop.permute.xlu0 %1306
        %1308 = vrot.lane.b32.xlu0 %v1079, 127
        %v1309 = vpop.permute.xlu0 %1308
        %1310 = vrot.lane.b32.xlu0 %v1081, 127
        %v1311 = vpop.permute.xlu0 %1310
        %v1320 = vcombine.low %v1297, %v1305
        %v1321 = vcombine.high %v1297, %v1305
        %v1323 = vunpack.c.l.s4 1983009808
        %v1324 = vunpack.c.0.s8 %v1323
        %v1325 = vlaneseq
        %v1326 = vshrl.u32 %v1325, 7
        %v1327 = vsub.s32 %v1324, %v1326
        %v1328 = vrot.slane %v1320, %v1327
        %v1330 = vunpack.c.l.s4 1983009808
        %v1331 = vunpack.c.0.s8 %v1330
        %v1332 = vlaneseq
        %v1333 = vshrl.u32 %v1332, 7
        %v1334 = vsub.s32 %v1331, %v1333
        %v1335 = vrot.slane %v1321, %v1334
        %v1336 = vcombine.low %v1301, %v1309
        %v1337 = vcombine.high %v1301, %v1309
        %v1339 = vunpack.c.l.s4 1983009808
        %v1340 = vunpack.c.0.s8 %v1339
        %v1341 = vlaneseq
        %v1342 = vshrl.u32 %v1341, 7
        %v1343 = vsub.s32 %v1340, %v1342
        %v1344 = vrot.slane %v1336, %v1343
        %v1346 = vunpack.c.l.s4 1983009808
        %v1347 = vunpack.c.0.s8 %v1346
        %v1348 = vlaneseq
        %v1349 = vshrl.u32 %v1348, 7
        %v1350 = vsub.s32 %v1347, %v1349
        %v1351 = vrot.slane %v1337, %v1350
        %v1352 = vcombine.low %v1328, %v1344
        %v1353 = vcombine.high %v1328, %v1344
        %v1355 = vunpack.c.l.s4 1934713408
        %v1356 = vunpack.c.0.s8 %v1355
        %v1357 = vlaneseq
        %v1358 = vshrl.u32 %v1357, 7
        %v1359 = vsub.s32 %v1356, %v1358
        %v1360 = vrot.slane %v1352, %v1359
        %v1362 = vunpack.c.l.s4 1934713408
        %v1363 = vunpack.c.0.s8 %v1362
        %v1364 = vlaneseq
        %v1365 = vshrl.u32 %v1364, 7
        %v1366 = vsub.s32 %v1363, %v1365
        %v1367 = vrot.slane %v1353, %v1366
        %v1368 = vcombine.low %v1335, %v1351
        %v1369 = vcombine.high %v1335, %v1351
        %v1371 = vunpack.c.l.s4 1934713408
        %v1372 = vunpack.c.0.s8 %v1371
        %v1373 = vlaneseq
        %v1374 = vshrl.u32 %v1373, 7
        %v1375 = vsub.s32 %v1372, %v1374
        %v1376 = vrot.slane %v1368, %v1375
        %v1378 = vunpack.c.l.s4 1934713408
        %v1379 = vunpack.c.0.s8 %v1378
        %v1380 = vlaneseq
        %v1381 = vshrl.u32 %v1380, 7
        %v1382 = vsub.s32 %v1379, %v1381
        %v1383 = vrot.slane %v1369, %v1382
        %v1384 = vcombine.high %v1360, 0.0
        %v1385 = vcombine.high %v1367, 0.0
        %v1386 = vcombine.high %v1376, 0.0
        %v1387 = vcombine.high %v1383, 0.0
        %v1388 = vcombine.low %v1299, %v1307
        %v1389 = vcombine.high %v1299, %v1307
        %v1391 = vunpack.c.l.s4 1983009808
        %v1392 = vunpack.c.0.s8 %v1391
        %v1393 = vlaneseq
        %v1394 = vshrl.u32 %v1393, 7
        %v1395 = vsub.s32 %v1392, %v1394
        %v1396 = vrot.slane %v1388, %v1395
        %v1398 = vunpack.c.l.s4 1983009808
        %v1399 = vunpack.c.0.s8 %v1398
        %v1400 = vlaneseq
        %v1401 = vshrl.u32 %v1400, 7
        %v1402 = vsub.s32 %v1399, %v1401
        %v1403 = vrot.slane %v1389, %v1402
        %v1404 = vcombine.low %v1303, %v1311
        %v1405 = vcombine.high %v1303, %v1311
        %v1407 = vunpack.c.l.s4 1983009808
        %v1408 = vunpack.c.0.s8 %v1407
        %v1409 = vlaneseq
        %v1410 = vshrl.u32 %v1409, 7
        %v1411 = vsub.s32 %v1408, %v1410
        %v1412 = vrot.slane %v1404, %v1411
        %v1414 = vunpack.c.l.s4 1983009808
        %v1415 = vunpack.c.0.s8 %v1414
        %v1416 = vlaneseq
        %v1417 = vshrl.u32 %v1416, 7
        %v1418 = vsub.s32 %v1415, %v1417
        %v1419 = vrot.slane %v1405, %v1418
        %v1420 = vcombine.low %v1396, %v1412
        %v1421 = vcombine.high %v1396, %v1412
        %v1423 = vunpack.c.l.s4 1934713408
        %v1424 = vunpack.c.0.s8 %v1423
        %v1425 = vlaneseq
        %v1426 = vshrl.u32 %v1425, 7
        %v1427 = vsub.s32 %v1424, %v1426
        %v1428 = vrot.slane %v1420, %v1427
        %v1430 = vunpack.c.l.s4 1934713408
        %v1431 = vunpack.c.0.s8 %v1430
        %v1432 = vlaneseq
        %v1433 = vshrl.u32 %v1432, 7
        %v1434 = vsub.s32 %v1431, %v1433
        %v1435 = vrot.slane %v1421, %v1434
        %v1436 = vcombine.low %v1403, %v1419
        %v1437 = vcombine.high %v1403, %v1419
        %v1439 = vunpack.c.l.s4 1934713408
        %v1440 = vunpack.c.0.s8 %v1439
        %v1441 = vlaneseq
        %v1442 = vshrl.u32 %v1441, 7
        %v1443 = vsub.s32 %v1440, %v1442
        %v1444 = vrot.slane %v1436, %v1443
        %v1446 = vunpack.c.l.s4 1934713408
        %v1447 = vunpack.c.0.s8 %v1446
        %v1448 = vlaneseq
        %v1449 = vshrl.u32 %v1448, 7
        %v1450 = vsub.s32 %v1447, %v1449
        %v1451 = vrot.slane %v1437, %v1450
        %v1452 = vcombine.high %v1428, 0.0
        %v1453 = vcombine.high %v1435, 0.0
        %v1454 = vcombine.high %v1444, 0.0
        %v1455 = vcombine.high %v1451, 0.0
        %1457 = vrot.lane.b32.xlu0 %v1384, 16
        %v1458 = vpop.permute.xlu0 %1457
        %1461 = vrot.lane.b32.xlu0 %v1367, 32
        %v1462 = vpop.permute.xlu0 %1461
        %1465 = vrot.lane.b32.xlu0 %v1385, 48
        %v1466 = vpop.permute.xlu0 %1465
        %1469 = vrot.lane.b32.xlu0 %v1376, 64
        %v1470 = vpop.permute.xlu0 %1469
        %1473 = vrot.lane.b32.xlu0 %v1386, 80
        %v1474 = vpop.permute.xlu0 %1473
        %1477 = vrot.lane.b32.xlu0 %v1383, 96
        %v1478 = vpop.permute.xlu0 %1477
        %1481 = vrot.lane.b32.xlu0 %v1387, 112
        %v1482 = vpop.permute.xlu0 %1481
        %1485 = vrot.lane.b32.xlu0 %v1452, 16
        %v1486 = vpop.permute.xlu0 %1485
        %1489 = vrot.lane.b32.xlu0 %v1435, 32
        %v1490 = vpop.permute.xlu0 %1489
        %1493 = vrot.lane.b32.xlu0 %v1453, 48
        %v1494 = vpop.permute.xlu0 %1493
        %1497 = vrot.lane.b32.xlu0 %v1444, 64
        %v1498 = vpop.permute.xlu0 %1497
        %1501 = vrot.lane.b32.xlu0 %v1454, 80
        %v1502 = vpop.permute.xlu0 %1501
        %1505 = vrot.lane.b32.xlu0 %v1451, 96
        %v1506 = vpop.permute.xlu0 %1505
        %1509 = vrot.lane.b32.xlu0 %v1455, 112
        %v1510 = vpop.permute.xlu0 %1509
        %v1512 = vsel %vm568, %v1360, %v1458
        %v1513 = vsel %vm570, %v1512, %v1462
        %v1514 = vsel %vm572, %v1513, %v1466
        %v1515 = vsel %vm574, %v1514, %v1470
        %v1516 = vsel %vm576, %v1515, %v1474
        %v1517 = vsel %vm578, %v1516, %v1478
        %v1518 = vsel %vm580, %v1517, %v1482
        %v1519 = vsel %vm568, %v1428, %v1486
        %v1520 = vsel %vm570, %v1519, %v1490
        %v1521 = vsel %vm572, %v1520, %v1494
        %v1522 = vsel %vm574, %v1521, %v1498
        %v1523 = vsel %vm576, %v1522, %v1502
        %v1524 = vsel %vm578, %v1523, %v1506
        %v1525 = vsel %vm580, %v1524, %v1510
        %1526 = vrot.lane.b32.xlu0 %v1064, 126
        %v1527 = vpop.permute.xlu0 %1526
        %1528 = vrot.lane.b32.xlu0 %v1066, 126
        %v1529 = vpop.permute.xlu0 %1528
        %1530 = vrot.lane.b32.xlu0 %v1069, 126
        %v1531 = vpop.permute.xlu0 %1530
        %1532 = vrot.lane.b32.xlu0 %v1071, 126
        %v1533 = vpop.permute.xlu0 %1532
        %1534 = vrot.lane.b32.xlu0 %v1074, 126
        %v1535 = vpop.permute.xlu0 %1534
        %1536 = vrot.lane.b32.xlu0 %v1076, 126
        %v1537 = vpop.permute.xlu0 %1536
        %1538 = vrot.lane.b32.xlu0 %v1079, 126
        %v1539 = vpop.permute.xlu0 %1538
        %1540 = vrot.lane.b32.xlu0 %v1081, 126
        %v1541 = vpop.permute.xlu0 %1540
        %v1550 = vcombine.low %v1527, %v1535
        %v1551 = vcombine.high %v1527, %v1535
        %v1553 = vunpack.c.l.s4 1983009808
        %v1554 = vunpack.c.0.s8 %v1553
        %v1555 = vlaneseq
        %v1556 = vshrl.u32 %v1555, 7
        %v1557 = vsub.s32 %v1554, %v1556
        %v1558 = vrot.slane %v1550, %v1557
        %v1560 = vunpack.c.l.s4 1983009808
        %v1561 = vunpack.c.0.s8 %v1560
        %v1562 = vlaneseq
        %v1563 = vshrl.u32 %v1562, 7
        %v1564 = vsub.s32 %v1561, %v1563
        %v1565 = vrot.slane %v1551, %v1564
        %v1566 = vcombine.low %v1531, %v1539
        %v1567 = vcombine.high %v1531, %v1539
        %v1569 = vunpack.c.l.s4 1983009808
        %v1570 = vunpack.c.0.s8 %v1569
        %v1571 = vlaneseq
        %v1572 = vshrl.u32 %v1571, 7
        %v1573 = vsub.s32 %v1570, %v1572
        %v1574 = vrot.slane %v1566, %v1573
        %v1576 = vunpack.c.l.s4 1983009808
        %v1577 = vunpack.c.0.s8 %v1576
        %v1578 = vlaneseq
        %v1579 = vshrl.u32 %v1578, 7
        %v1580 = vsub.s32 %v1577, %v1579
        %v1581 = vrot.slane %v1567, %v1580
        %v1582 = vcombine.low %v1558, %v1574
        %v1583 = vcombine.high %v1558, %v1574
        %v1585 = vunpack.c.l.s4 1934713408
        %v1586 = vunpack.c.0.s8 %v1585
        %v1587 = vlaneseq
        %v1588 = vshrl.u32 %v1587, 7
        %v1589 = vsub.s32 %v1586, %v1588
        %v1590 = vrot.slane %v1582, %v1589
        %v1592 = vunpack.c.l.s4 1934713408
        %v1593 = vunpack.c.0.s8 %v1592
        %v1594 = vlaneseq
        %v1595 = vshrl.u32 %v1594, 7
        %v1596 = vsub.s32 %v1593, %v1595
        %v1597 = vrot.slane %v1583, %v1596
        %v1598 = vcombine.low %v1565, %v1581
        %v1599 = vcombine.high %v1565, %v1581
        %v1601 = vunpack.c.l.s4 1934713408
        %v1602 = vunpack.c.0.s8 %v1601
        %v1603 = vlaneseq
        %v1604 = vshrl.u32 %v1603, 7
        %v1605 = vsub.s32 %v1602, %v1604
        %v1606 = vrot.slane %v1598, %v1605
        %v1608 = vunpack.c.l.s4 1934713408
        %v1609 = vunpack.c.0.s8 %v1608
        %v1610 = vlaneseq
        %v1611 = vshrl.u32 %v1610, 7
        %v1612 = vsub.s32 %v1609, %v1611
        %v1613 = vrot.slane %v1599, %v1612
        %v1614 = vcombine.high %v1590, 0.0
        %v1615 = vcombine.high %v1597, 0.0
        %v1616 = vcombine.high %v1606, 0.0
        %v1617 = vcombine.high %v1613, 0.0
        %v1618 = vcombine.low %v1529, %v1537
        %v1619 = vcombine.high %v1529, %v1537
        %v1621 = vunpack.c.l.s4 1983009808
        %v1622 = vunpack.c.0.s8 %v1621
        %v1623 = vlaneseq
        %v1624 = vshrl.u32 %v1623, 7
        %v1625 = vsub.s32 %v1622, %v1624
        %v1626 = vrot.slane %v1618, %v1625
        %v1628 = vunpack.c.l.s4 1983009808
        %v1629 = vunpack.c.0.s8 %v1628
        %v1630 = vlaneseq
        %v1631 = vshrl.u32 %v1630, 7
        %v1632 = vsub.s32 %v1629, %v1631
        %v1633 = vrot.slane %v1619, %v1632
        %v1634 = vcombine.low %v1533, %v1541
        %v1635 = vcombine.high %v1533, %v1541
        %v1637 = vunpack.c.l.s4 1983009808
        %v1638 = vunpack.c.0.s8 %v1637
        %v1639 = vlaneseq
        %v1640 = vshrl.u32 %v1639, 7
        %v1641 = vsub.s32 %v1638, %v1640
        %v1642 = vrot.slane %v1634, %v1641
        %v1644 = vunpack.c.l.s4 1983009808
        %v1645 = vunpack.c.0.s8 %v1644
        %v1646 = vlaneseq
        %v1647 = vshrl.u32 %v1646, 7
        %v1648 = vsub.s32 %v1645, %v1647
        %v1649 = vrot.slane %v1635, %v1648
        %v1650 = vcombine.low %v1626, %v1642
        %v1651 = vcombine.high %v1626, %v1642
        %v1653 = vunpack.c.l.s4 1934713408
        %v1654 = vunpack.c.0.s8 %v1653
        %v1655 = vlaneseq
        %v1656 = vshrl.u32 %v1655, 7
        %v1657 = vsub.s32 %v1654, %v1656
        %v1658 = vrot.slane %v1650, %v1657
        %v1660 = vunpack.c.l.s4 1934713408
        %v1661 = vunpack.c.0.s8 %v1660
        %v1662 = vlaneseq
        %v1663 = vshrl.u32 %v1662, 7
        %v1664 = vsub.s32 %v1661, %v1663
        %v1665 = vrot.slane %v1651, %v1664
        %v1666 = vcombine.low %v1633, %v1649
        %v1667 = vcombine.high %v1633, %v1649
        %v1669 = vunpack.c.l.s4 1934713408
        %v1670 = vunpack.c.0.s8 %v1669
        %v1671 = vlaneseq
        %v1672 = vshrl.u32 %v1671, 7
        %v1673 = vsub.s32 %v1670, %v1672
        %v1674 = vrot.slane %v1666, %v1673
        %v1676 = vunpack.c.l.s4 1934713408
        %v1677 = vunpack.c.0.s8 %v1676
        %v1678 = vlaneseq
        %v1679 = vshrl.u32 %v1678, 7
        %v1680 = vsub.s32 %v1677, %v1679
        %v1681 = vrot.slane %v1667, %v1680
        %v1682 = vcombine.high %v1658, 0.0
        %v1683 = vcombine.high %v1665, 0.0
        %v1684 = vcombine.high %v1674, 0.0
        %v1685 = vcombine.high %v1681, 0.0
        %1687 = vrot.lane.b32.xlu0 %v1614, 16
        %v1688 = vpop.permute.xlu0 %1687
        %1691 = vrot.lane.b32.xlu0 %v1597, 32
        %v1692 = vpop.permute.xlu0 %1691
        %1695 = vrot.lane.b32.xlu0 %v1615, 48
        %v1696 = vpop.permute.xlu0 %1695
        %1699 = vrot.lane.b32.xlu0 %v1606, 64
        %v1700 = vpop.permute.xlu0 %1699
        %1703 = vrot.lane.b32.xlu0 %v1616, 80
        %v1704 = vpop.permute.xlu0 %1703
        %1707 = vrot.lane.b32.xlu0 %v1613, 96
        %v1708 = vpop.permute.xlu0 %1707
        %1711 = vrot.lane.b32.xlu0 %v1617, 112
        %v1712 = vpop.permute.xlu0 %1711
        %1715 = vrot.lane.b32.xlu0 %v1682, 16
        %v1716 = vpop.permute.xlu0 %1715
        %1719 = vrot.lane.b32.xlu0 %v1665, 32
        %v1720 = vpop.permute.xlu0 %1719
        %1723 = vrot.lane.b32.xlu0 %v1683, 48
        %v1724 = vpop.permute.xlu0 %1723
        %1727 = vrot.lane.b32.xlu0 %v1674, 64
        %v1728 = vpop.permute.xlu0 %1727
        %1731 = vrot.lane.b32.xlu0 %v1684, 80
        %v1732 = vpop.permute.xlu0 %1731
        %1735 = vrot.lane.b32.xlu0 %v1681, 96
        %v1736 = vpop.permute.xlu0 %1735
        %1739 = vrot.lane.b32.xlu0 %v1685, 112
        %v1740 = vpop.permute.xlu0 %1739
        %v1742 = vsel %vm568, %v1590, %v1688
        %v1743 = vsel %vm570, %v1742, %v1692
        %v1744 = vsel %vm572, %v1743, %v1696
        %v1745 = vsel %vm574, %v1744, %v1700
        %v1746 = vsel %vm576, %v1745, %v1704
        %v1747 = vsel %vm578, %v1746, %v1708
        %v1748 = vsel %vm580, %v1747, %v1712
        %v1749 = vsel %vm568, %v1658, %v1716
        %v1750 = vsel %vm570, %v1749, %v1720
        %v1751 = vsel %vm572, %v1750, %v1724
        %v1752 = vsel %vm574, %v1751, %v1728
        %v1753 = vsel %vm576, %v1752, %v1732
        %v1754 = vsel %vm578, %v1753, %v1736
        %v1755 = vsel %vm580, %v1754, %v1740
        %vm1756 = vcmask 1045504
        %v1757 = vrot.slane %v364, 2
        %v1758 = vrot.slane %v365, 2
        %v1759 = vsel %vm1756, %v1757, %v1758
        %v1760 = vrot.slane %v366, 2
        %v1761 = vsel %vm1756, %v1758, %v1760
        %v1762 = vrot.slane %v367, 2
        %v1763 = vrot.slane %v368, 2
        %v1764 = vsel %vm1756, %v1762, %v1763
        %v1765 = vrot.slane %v369, 2
        %v1766 = vsel %vm1756, %v1763, %v1765
        %v1767 = vrot.slane %v370, 2
        %v1768 = vrot.slane %v371, 2
        %v1769 = vsel %vm1756, %v1767, %v1768
        %v1770 = vrot.slane %v372, 2
        %v1771 = vsel %vm1756, %v1768, %v1770
        %v1772 = vrot.slane %v373, 2
        %v1773 = vrot.slane %v374, 2
        %v1774 = vsel %vm1756, %v1772, %v1773
        %v1775 = vrot.slane %v375, 2
        %v1776 = vsel %vm1756, %v1773, %v1775
        %v1785 = vcombine.low %v1759, %v1769
        %v1786 = vcombine.high %v1759, %v1769
        %v1788 = vunpack.c.l.s4 1983009808
        %v1789 = vunpack.c.0.s8 %v1788
        %v1790 = vlaneseq
        %v1791 = vshrl.u32 %v1790, 7
        %v1792 = vsub.s32 %v1789, %v1791
        %v1793 = vrot.slane %v1785, %v1792
        %v1795 = vunpack.c.l.s4 1983009808
        %v1796 = vunpack.c.0.s8 %v1795
        %v1797 = vlaneseq
        %v1798 = vshrl.u32 %v1797, 7
        %v1799 = vsub.s32 %v1796, %v1798
        %v1800 = vrot.slane %v1786, %v1799
        %v1801 = vcombine.low %v1764, %v1774
        %v1802 = vcombine.high %v1764, %v1774
        %v1804 = vunpack.c.l.s4 1983009808
        %v1805 = vunpack.c.0.s8 %v1804
        %v1806 = vlaneseq
        %v1807 = vshrl.u32 %v1806, 7
        %v1808 = vsub.s32 %v1805, %v1807
        %v1809 = vrot.slane %v1801, %v1808
        %v1811 = vunpack.c.l.s4 1983009808
        %v1812 = vunpack.c.0.s8 %v1811
        %v1813 = vlaneseq
        %v1814 = vshrl.u32 %v1813, 7
        %v1815 = vsub.s32 %v1812, %v1814
        %v1816 = vrot.slane %v1802, %v1815
        %v1817 = vcombine.low %v1793, %v1809
        %v1818 = vcombine.high %v1793, %v1809
        %v1820 = vunpack.c.l.s4 1934713408
        %v1821 = vunpack.c.0.s8 %v1820
        %v1822 = vlaneseq
        %v1823 = vshrl.u32 %v1822, 7
        %v1824 = vsub.s32 %v1821, %v1823
        %v1825 = vrot.slane %v1817, %v1824
        %v1827 = vunpack.c.l.s4 1934713408
        %v1828 = vunpack.c.0.s8 %v1827
        %v1829 = vlaneseq
        %v1830 = vshrl.u32 %v1829, 7
        %v1831 = vsub.s32 %v1828, %v1830
        %v1832 = vrot.slane %v1818, %v1831
        %v1833 = vcombine.low %v1800, %v1816
        %v1834 = vcombine.high %v1800, %v1816
        %v1836 = vunpack.c.l.s4 1934713408
        %v1837 = vunpack.c.0.s8 %v1836
        %v1838 = vlaneseq
        %v1839 = vshrl.u32 %v1838, 7
        %v1840 = vsub.s32 %v1837, %v1839
        %v1841 = vrot.slane %v1833, %v1840
        %v1843 = vunpack.c.l.s4 1934713408
        %v1844 = vunpack.c.0.s8 %v1843
        %v1845 = vlaneseq
        %v1846 = vshrl.u32 %v1845, 7
        %v1847 = vsub.s32 %v1844, %v1846
        %v1848 = vrot.slane %v1834, %v1847
        %v1849 = vcombine.high %v1825, 0.0
        %v1850 = vcombine.high %v1832, 0.0
        %v1851 = vcombine.high %v1841, 0.0
        %v1852 = vcombine.high %v1848, 0.0
        %v1853 = vcombine.low %v1761, %v1771
        %v1854 = vcombine.high %v1761, %v1771
        %v1856 = vunpack.c.l.s4 1983009808
        %v1857 = vunpack.c.0.s8 %v1856
        %v1858 = vlaneseq
        %v1859 = vshrl.u32 %v1858, 7
        %v1860 = vsub.s32 %v1857, %v1859
        %v1861 = vrot.slane %v1853, %v1860
        %v1863 = vunpack.c.l.s4 1983009808
        %v1864 = vunpack.c.0.s8 %v1863
        %v1865 = vlaneseq
        %v1866 = vshrl.u32 %v1865, 7
        %v1867 = vsub.s32 %v1864, %v1866
        %v1868 = vrot.slane %v1854, %v1867
        %v1869 = vcombine.low %v1766, %v1776
        %v1870 = vcombine.high %v1766, %v1776
        %v1872 = vunpack.c.l.s4 1983009808
        %v1873 = vunpack.c.0.s8 %v1872
        %v1874 = vlaneseq
        %v1875 = vshrl.u32 %v1874, 7
        %v1876 = vsub.s32 %v1873, %v1875
        %v1877 = vrot.slane %v1869, %v1876
        %v1879 = vunpack.c.l.s4 1983009808
        %v1880 = vunpack.c.0.s8 %v1879
        %v1881 = vlaneseq
        %v1882 = vshrl.u32 %v1881, 7
        %v1883 = vsub.s32 %v1880, %v1882
        %v1884 = vrot.slane %v1870, %v1883
        %v1885 = vcombine.low %v1861, %v1877
        %v1886 = vcombine.high %v1861, %v1877
        %v1888 = vunpack.c.l.s4 1934713408
        %v1889 = vunpack.c.0.s8 %v1888
        %v1890 = vlaneseq
        %v1891 = vshrl.u32 %v1890, 7
        %v1892 = vsub.s32 %v1889, %v1891
        %v1893 = vrot.slane %v1885, %v1892
        %v1895 = vunpack.c.l.s4 1934713408
        %v1896 = vunpack.c.0.s8 %v1895
        %v1897 = vlaneseq
        %v1898 = vshrl.u32 %v1897, 7
        %v1899 = vsub.s32 %v1896, %v1898
        %v1900 = vrot.slane %v1886, %v1899
        %v1901 = vcombine.low %v1868, %v1884
        %v1902 = vcombine.high %v1868, %v1884
        %v1904 = vunpack.c.l.s4 1934713408
        %v1905 = vunpack.c.0.s8 %v1904
        %v1906 = vlaneseq
        %v1907 = vshrl.u32 %v1906, 7
        %v1908 = vsub.s32 %v1905, %v1907
        %v1909 = vrot.slane %v1901, %v1908
        %v1911 = vunpack.c.l.s4 1934713408
        %v1912 = vunpack.c.0.s8 %v1911
        %v1913 = vlaneseq
        %v1914 = vshrl.u32 %v1913, 7
        %v1915 = vsub.s32 %v1912, %v1914
        %v1916 = vrot.slane %v1902, %v1915
        %v1917 = vcombine.high %v1893, 0.0
        %v1918 = vcombine.high %v1900, 0.0
        %v1919 = vcombine.high %v1909, 0.0
        %v1920 = vcombine.high %v1916, 0.0
        %1922 = vrot.lane.b32.xlu0 %v1849, 16
        %v1923 = vpop.permute.xlu0 %1922
        %1926 = vrot.lane.b32.xlu0 %v1832, 32
        %v1927 = vpop.permute.xlu0 %1926
        %1930 = vrot.lane.b32.xlu0 %v1850, 48
        %v1931 = vpop.permute.xlu0 %1930
        %1934 = vrot.lane.b32.xlu0 %v1841, 64
        %v1935 = vpop.permute.xlu0 %1934
        %1938 = vrot.lane.b32.xlu0 %v1851, 80
        %v1939 = vpop.permute.xlu0 %1938
        %1942 = vrot.lane.b32.xlu0 %v1848, 96
        %v1943 = vpop.permute.xlu0 %1942
        %1946 = vrot.lane.b32.xlu0 %v1852, 112
        %v1947 = vpop.permute.xlu0 %1946
        %1950 = vrot.lane.b32.xlu0 %v1917, 16
        %v1951 = vpop.permute.xlu0 %1950
        %1954 = vrot.lane.b32.xlu0 %v1900, 32
        %v1955 = vpop.permute.xlu0 %1954
        %1958 = vrot.lane.b32.xlu0 %v1918, 48
        %v1959 = vpop.permute.xlu0 %1958
        %1962 = vrot.lane.b32.xlu0 %v1909, 64
        %v1963 = vpop.permute.xlu0 %1962
        %1966 = vrot.lane.b32.xlu0 %v1919, 80
        %v1967 = vpop.permute.xlu0 %1966
        %1970 = vrot.lane.b32.xlu0 %v1916, 96
        %v1971 = vpop.permute.xlu0 %1970
        %1974 = vrot.lane.b32.xlu0 %v1920, 112
        %v1975 = vpop.permute.xlu0 %1974
        %v1977 = vsel %vm568, %v1825, %v1923
        %v1978 = vsel %vm570, %v1977, %v1927
        %v1979 = vsel %vm572, %v1978, %v1931
        %v1980 = vsel %vm574, %v1979, %v1935
        %v1981 = vsel %vm576, %v1980, %v1939
        %v1982 = vsel %vm578, %v1981, %v1943
        %v1983 = vsel %vm580, %v1982, %v1947
        %v1984 = vsel %vm568, %v1893, %v1951
        %v1985 = vsel %vm570, %v1984, %v1955
        %v1986 = vsel %vm572, %v1985, %v1959
        %v1987 = vsel %vm574, %v1986, %v1963
        %v1988 = vsel %vm576, %v1987, %v1967
        %v1989 = vsel %vm578, %v1988, %v1971
        %v1990 = vsel %vm580, %v1989, %v1975
        %1991 = vrot.lane.b32.xlu0 %v1759, 127
        %v1992 = vpop.permute.xlu0 %1991
        %1993 = vrot.lane.b32.xlu0 %v1761, 127
        %v1994 = vpop.permute.xlu0 %1993
        %1995 = vrot.lane.b32.xlu0 %v1764, 127
        %v1996 = vpop.permute.xlu0 %1995
        %1997 = vrot.lane.b32.xlu0 %v1766, 127
        %v1998 = vpop.permute.xlu0 %1997
        %1999 = vrot.lane.b32.xlu0 %v1769, 127
        %v2000 = vpop.permute.xlu0 %1999
        %2001 = vrot.lane.b32.xlu0 %v1771, 127
        %v2002 = vpop.permute.xlu0 %2001
        %2003 = vrot.lane.b32.xlu0 %v1774, 127
        %v2004 = vpop.permute.xlu0 %2003
        %2005 = vrot.lane.b32.xlu0 %v1776, 127
        %v2006 = vpop.permute.xlu0 %2005
        %v2015 = vcombine.low %v1992, %v2000
        %v2016 = vcombine.high %v1992, %v2000
        %v2018 = vunpack.c.l.s4 1983009808
        %v2019 = vunpack.c.0.s8 %v2018
        %v2020 = vlaneseq
        %v2021 = vshrl.u32 %v2020, 7
        %v2022 = vsub.s32 %v2019, %v2021
        %v2023 = vrot.slane %v2015, %v2022
        %v2025 = vunpack.c.l.s4 1983009808
        %v2026 = vunpack.c.0.s8 %v2025
        %v2027 = vlaneseq
        %v2028 = vshrl.u32 %v2027, 7
        %v2029 = vsub.s32 %v2026, %v2028
        %v2030 = vrot.slane %v2016, %v2029
        %v2031 = vcombine.low %v1996, %v2004
        %v2032 = vcombine.high %v1996, %v2004
        %v2034 = vunpack.c.l.s4 1983009808
        %v2035 = vunpack.c.0.s8 %v2034
        %v2036 = vlaneseq
        %v2037 = vshrl.u32 %v2036, 7
        %v2038 = vsub.s32 %v2035, %v2037
        %v2039 = vrot.slane %v2031, %v2038
        %v2041 = vunpack.c.l.s4 1983009808
        %v2042 = vunpack.c.0.s8 %v2041
        %v2043 = vlaneseq
        %v2044 = vshrl.u32 %v2043, 7
        %v2045 = vsub.s32 %v2042, %v2044
        %v2046 = vrot.slane %v2032, %v2045
        %v2047 = vcombine.low %v2023, %v2039
        %v2048 = vcombine.high %v2023, %v2039
        %v2050 = vunpack.c.l.s4 1934713408
        %v2051 = vunpack.c.0.s8 %v2050
        %v2052 = vlaneseq
        %v2053 = vshrl.u32 %v2052, 7
        %v2054 = vsub.s32 %v2051, %v2053
        %v2055 = vrot.slane %v2047, %v2054
        %v2057 = vunpack.c.l.s4 1934713408
        %v2058 = vunpack.c.0.s8 %v2057
        %v2059 = vlaneseq
        %v2060 = vshrl.u32 %v2059, 7
        %v2061 = vsub.s32 %v2058, %v2060
        %v2062 = vrot.slane %v2048, %v2061
        %v2063 = vcombine.low %v2030, %v2046
        %v2064 = vcombine.high %v2030, %v2046
        %v2066 = vunpack.c.l.s4 1934713408
        %v2067 = vunpack.c.0.s8 %v2066
        %v2068 = vlaneseq
        %v2069 = vshrl.u32 %v2068, 7
        %v2070 = vsub.s32 %v2067, %v2069
        %v2071 = vrot.slane %v2063, %v2070
        %v2073 = vunpack.c.l.s4 1934713408
        %v2074 = vunpack.c.0.s8 %v2073
        %v2075 = vlaneseq
        %v2076 = vshrl.u32 %v2075, 7
        %v2077 = vsub.s32 %v2074, %v2076
        %v2078 = vrot.slane %v2064, %v2077
        %v2079 = vcombine.high %v2055, 0.0
        %v2080 = vcombine.high %v2062, 0.0
        %v2081 = vcombine.high %v2071, 0.0
        %v2082 = vcombine.high %v2078, 0.0
        %v2083 = vcombine.low %v1994, %v2002
        %v2084 = vcombine.high %v1994, %v2002
        %v2086 = vunpack.c.l.s4 1983009808
        %v2087 = vunpack.c.0.s8 %v2086
        %v2088 = vlaneseq
        %v2089 = vshrl.u32 %v2088, 7
        %v2090 = vsub.s32 %v2087, %v2089
        %v2091 = vrot.slane %v2083, %v2090
        %v2093 = vunpack.c.l.s4 1983009808
        %v2094 = vunpack.c.0.s8 %v2093
        %v2095 = vlaneseq
        %v2096 = vshrl.u32 %v2095, 7
        %v2097 = vsub.s32 %v2094, %v2096
        %v2098 = vrot.slane %v2084, %v2097
        %v2099 = vcombine.low %v1998, %v2006
        %v2100 = vcombine.high %v1998, %v2006
        %v2102 = vunpack.c.l.s4 1983009808
        %v2103 = vunpack.c.0.s8 %v2102
        %v2104 = vlaneseq
        %v2105 = vshrl.u32 %v2104, 7
        %v2106 = vsub.s32 %v2103, %v2105
        %v2107 = vrot.slane %v2099, %v2106
        %v2109 = vunpack.c.l.s4 1983009808
        %v2110 = vunpack.c.0.s8 %v2109
        %v2111 = vlaneseq
        %v2112 = vshrl.u32 %v2111, 7
        %v2113 = vsub.s32 %v2110, %v2112
        %v2114 = vrot.slane %v2100, %v2113
        %v2115 = vcombine.low %v2091, %v2107
        %v2116 = vcombine.high %v2091, %v2107
        %v2118 = vunpack.c.l.s4 1934713408
        %v2119 = vunpack.c.0.s8 %v2118
        %v2120 = vlaneseq
        %v2121 = vshrl.u32 %v2120, 7
        %v2122 = vsub.s32 %v2119, %v2121
        %v2123 = vrot.slane %v2115, %v2122
        %v2125 = vunpack.c.l.s4 1934713408
        %v2126 = vunpack.c.0.s8 %v2125
        %v2127 = vlaneseq
        %v2128 = vshrl.u32 %v2127, 7
        %v2129 = vsub.s32 %v2126, %v2128
        %v2130 = vrot.slane %v2116, %v2129
        %v2131 = vcombine.low %v2098, %v2114
        %v2132 = vcombine.high %v2098, %v2114
        %v2134 = vunpack.c.l.s4 1934713408
        %v2135 = vunpack.c.0.s8 %v2134
        %v2136 = vlaneseq
        %v2137 = vshrl.u32 %v2136, 7
        %v2138 = vsub.s32 %v2135, %v2137
        %v2139 = vrot.slane %v2131, %v2138
        %v2141 = vunpack.c.l.s4 1934713408
        %v2142 = vunpack.c.0.s8 %v2141
        %v2143 = vlaneseq
        %v2144 = vshrl.u32 %v2143, 7
        %v2145 = vsub.s32 %v2142, %v2144
        %v2146 = vrot.slane %v2132, %v2145
        %v2147 = vcombine.high %v2123, 0.0
        %v2148 = vcombine.high %v2130, 0.0
        %v2149 = vcombine.high %v2139, 0.0
        %v2150 = vcombine.high %v2146, 0.0
        %2152 = vrot.lane.b32.xlu0 %v2079, 16
        %v2153 = vpop.permute.xlu0 %2152
        %2156 = vrot.lane.b32.xlu0 %v2062, 32
        %v2157 = vpop.permute.xlu0 %2156
        %2160 = vrot.lane.b32.xlu0 %v2080, 48
        %v2161 = vpop.permute.xlu0 %2160
        %2164 = vrot.lane.b32.xlu0 %v2071, 64
        %v2165 = vpop.permute.xlu0 %2164
        %2168 = vrot.lane.b32.xlu0 %v2081, 80
        %v2169 = vpop.permute.xlu0 %2168
        %2172 = vrot.lane.b32.xlu0 %v2078, 96
        %v2173 = vpop.permute.xlu0 %2172
        %2176 = vrot.lane.b32.xlu0 %v2082, 112
        %v2177 = vpop.permute.xlu0 %2176
        %2180 = vrot.lane.b32.xlu0 %v2147, 16
        %v2181 = vpop.permute.xlu0 %2180
        %2184 = vrot.lane.b32.xlu0 %v2130, 32
        %v2185 = vpop.permute.xlu0 %2184
        %2188 = vrot.lane.b32.xlu0 %v2148, 48
        %v2189 = vpop.permute.xlu0 %2188
        %2192 = vrot.lane.b32.xlu0 %v2139, 64
        %v2193 = vpop.permute.xlu0 %2192
        %2196 = vrot.lane.b32.xlu0 %v2149, 80
        %v2197 = vpop.permute.xlu0 %2196
        %2200 = vrot.lane.b32.xlu0 %v2146, 96
        %v2201 = vpop.permute.xlu0 %2200
        %2204 = vrot.lane.b32.xlu0 %v2150, 112
        %v2205 = vpop.permute.xlu0 %2204
        %v2207 = vsel %vm568, %v2055, %v2153
        %v2208 = vsel %vm570, %v2207, %v2157
        %v2209 = vsel %vm572, %v2208, %v2161
        %v2210 = vsel %vm574, %v2209, %v2165
        %v2211 = vsel %vm576, %v2210, %v2169
        %v2212 = vsel %vm578, %v2211, %v2173
        %v2213 = vsel %vm580, %v2212, %v2177
        %v2214 = vsel %vm568, %v2123, %v2181
        %v2215 = vsel %vm570, %v2214, %v2185
        %v2216 = vsel %vm572, %v2215, %v2189
        %v2217 = vsel %vm574, %v2216, %v2193
        %v2218 = vsel %vm576, %v2217, %v2197
        %v2219 = vsel %vm578, %v2218, %v2201
        %v2220 = vsel %vm580, %v2219, %v2205
        %2221 = vrot.lane.b32.xlu0 %v1759, 126
        %v2222 = vpop.permute.xlu0 %2221
        %2223 = vrot.lane.b32.xlu0 %v1761, 126
        %v2224 = vpop.permute.xlu0 %2223
        %2225 = vrot.lane.b32.xlu0 %v1764, 126
        %v2226 = vpop.permute.xlu0 %2225
        %2227 = vrot.lane.b32.xlu0 %v1766, 126
        %v2228 = vpop.permute.xlu0 %2227
        %2229 = vrot.lane.b32.xlu0 %v1769, 126
        %v2230 = vpop.permute.xlu0 %2229
        %2231 = vrot.lane.b32.xlu0 %v1771, 126
        %v2232 = vpop.permute.xlu0 %2231
        %2233 = vrot.lane.b32.xlu0 %v1774, 126
        %v2234 = vpop.permute.xlu0 %2233
        %2235 = vrot.lane.b32.xlu0 %v1776, 126
        %v2236 = vpop.permute.xlu0 %2235
        %v2245 = vcombine.low %v2222, %v2230
        %v2246 = vcombine.high %v2222, %v2230
        %v2248 = vunpack.c.l.s4 1983009808
        %v2249 = vunpack.c.0.s8 %v2248
        %v2250 = vlaneseq
        %v2251 = vshrl.u32 %v2250, 7
        %v2252 = vsub.s32 %v2249, %v2251
        %v2253 = vrot.slane %v2245, %v2252
        %v2255 = vunpack.c.l.s4 1983009808
        %v2256 = vunpack.c.0.s8 %v2255
        %v2257 = vlaneseq
        %v2258 = vshrl.u32 %v2257, 7
        %v2259 = vsub.s32 %v2256, %v2258
        %v2260 = vrot.slane %v2246, %v2259
        %v2261 = vcombine.low %v2226, %v2234
        %v2262 = vcombine.high %v2226, %v2234
        %v2264 = vunpack.c.l.s4 1983009808
        %v2265 = vunpack.c.0.s8 %v2264
        %v2266 = vlaneseq
        %v2267 = vshrl.u32 %v2266, 7
        %v2268 = vsub.s32 %v2265, %v2267
        %v2269 = vrot.slane %v2261, %v2268
        %v2271 = vunpack.c.l.s4 1983009808
        %v2272 = vunpack.c.0.s8 %v2271
        %v2273 = vlaneseq
        %v2274 = vshrl.u32 %v2273, 7
        %v2275 = vsub.s32 %v2272, %v2274
        %v2276 = vrot.slane %v2262, %v2275
        %v2277 = vcombine.low %v2253, %v2269
        %v2278 = vcombine.high %v2253, %v2269
        %v2280 = vunpack.c.l.s4 1934713408
        %v2281 = vunpack.c.0.s8 %v2280
        %v2282 = vlaneseq
        %v2283 = vshrl.u32 %v2282, 7
        %v2284 = vsub.s32 %v2281, %v2283
        %v2285 = vrot.slane %v2277, %v2284
        %v2287 = vunpack.c.l.s4 1934713408
        %v2288 = vunpack.c.0.s8 %v2287
        %v2289 = vlaneseq
        %v2290 = vshrl.u32 %v2289, 7
        %v2291 = vsub.s32 %v2288, %v2290
        %v2292 = vrot.slane %v2278, %v2291
        %v2293 = vcombine.low %v2260, %v2276
        %v2294 = vcombine.high %v2260, %v2276
        %v2296 = vunpack.c.l.s4 1934713408
        %v2297 = vunpack.c.0.s8 %v2296
        %v2298 = vlaneseq
        %v2299 = vshrl.u32 %v2298, 7
        %v2300 = vsub.s32 %v2297, %v2299
        %v2301 = vrot.slane %v2293, %v2300
        %v2303 = vunpack.c.l.s4 1934713408
        %v2304 = vunpack.c.0.s8 %v2303
        %v2305 = vlaneseq
        %v2306 = vshrl.u32 %v2305, 7
        %v2307 = vsub.s32 %v2304, %v2306
        %v2308 = vrot.slane %v2294, %v2307
        %v2309 = vcombine.high %v2285, 0.0
        %v2310 = vcombine.high %v2292, 0.0
        %v2311 = vcombine.high %v2301, 0.0
        %v2312 = vcombine.high %v2308, 0.0
        %v2313 = vcombine.low %v2224, %v2232
        %v2314 = vcombine.high %v2224, %v2232
        %v2316 = vunpack.c.l.s4 1983009808
        %v2317 = vunpack.c.0.s8 %v2316
        %v2318 = vlaneseq
        %v2319 = vshrl.u32 %v2318, 7
        %v2320 = vsub.s32 %v2317, %v2319
        %v2321 = vrot.slane %v2313, %v2320
        %v2323 = vunpack.c.l.s4 1983009808
        %v2324 = vunpack.c.0.s8 %v2323
        %v2325 = vlaneseq
        %v2326 = vshrl.u32 %v2325, 7
        %v2327 = vsub.s32 %v2324, %v2326
        %v2328 = vrot.slane %v2314, %v2327
        %v2329 = vcombine.low %v2228, %v2236
        %v2330 = vcombine.high %v2228, %v2236
        %v2332 = vunpack.c.l.s4 1983009808
        %v2333 = vunpack.c.0.s8 %v2332
        %v2334 = vlaneseq
        %v2335 = vshrl.u32 %v2334, 7
        %v2336 = vsub.s32 %v2333, %v2335
        %v2337 = vrot.slane %v2329, %v2336
        %v2339 = vunpack.c.l.s4 1983009808
        %v2340 = vunpack.c.0.s8 %v2339
        %v2341 = vlaneseq
        %v2342 = vshrl.u32 %v2341, 7
        %v2343 = vsub.s32 %v2340, %v2342
        %v2344 = vrot.slane %v2330, %v2343
        %v2345 = vcombine.low %v2321, %v2337
        %v2346 = vcombine.high %v2321, %v2337
        %v2348 = vunpack.c.l.s4 1934713408
        %v2349 = vunpack.c.0.s8 %v2348
        %v2350 = vlaneseq
        %v2351 = vshrl.u32 %v2350, 7
        %v2352 = vsub.s32 %v2349, %v2351
        %v2353 = vrot.slane %v2345, %v2352
        %v2355 = vunpack.c.l.s4 1934713408
        %v2356 = vunpack.c.0.s8 %v2355
        %v2357 = vlaneseq
        %v2358 = vshrl.u32 %v2357, 7
        %v2359 = vsub.s32 %v2356, %v2358
        %v2360 = vrot.slane %v2346, %v2359
        %v2361 = vcombine.low %v2328, %v2344
        %v2362 = vcombine.high %v2328, %v2344
        %v2364 = vunpack.c.l.s4 1934713408
        %v2365 = vunpack.c.0.s8 %v2364
        %v2366 = vlaneseq
        %v2367 = vshrl.u32 %v2366, 7
        %v2368 = vsub.s32 %v2365, %v2367
        %v2369 = vrot.slane %v2361, %v2368
        %v2371 = vunpack.c.l.s4 1934713408
        %v2372 = vunpack.c.0.s8 %v2371
        %v2373 = vlaneseq
        %v2374 = vshrl.u32 %v2373, 7
        %v2375 = vsub.s32 %v2372, %v2374
        %v2376 = vrot.slane %v2362, %v2375
        %v2377 = vcombine.high %v2353, 0.0
        %v2378 = vcombine.high %v2360, 0.0
        %v2379 = vcombine.high %v2369, 0.0
        %v2380 = vcombine.high %v2376, 0.0
        %2382 = vrot.lane.b32.xlu0 %v2309, 16
        %v2383 = vpop.permute.xlu0 %2382
        %2386 = vrot.lane.b32.xlu0 %v2292, 32
        %v2387 = vpop.permute.xlu0 %2386
        %2390 = vrot.lane.b32.xlu0 %v2310, 48
        %v2391 = vpop.permute.xlu0 %2390
        %2394 = vrot.lane.b32.xlu0 %v2301, 64
        %v2395 = vpop.permute.xlu0 %2394
        %2398 = vrot.lane.b32.xlu0 %v2311, 80
        %v2399 = vpop.permute.xlu0 %2398
        %2402 = vrot.lane.b32.xlu0 %v2308, 96
        %v2403 = vpop.permute.xlu0 %2402
        %2406 = vrot.lane.b32.xlu0 %v2312, 112
        %v2407 = vpop.permute.xlu0 %2406
        %2410 = vrot.lane.b32.xlu0 %v2377, 16
        %v2411 = vpop.permute.xlu0 %2410
        %2414 = vrot.lane.b32.xlu0 %v2360, 32
        %v2415 = vpop.permute.xlu0 %2414
        %2418 = vrot.lane.b32.xlu0 %v2378, 48
        %v2419 = vpop.permute.xlu0 %2418
        %2422 = vrot.lane.b32.xlu0 %v2369, 64
        %v2423 = vpop.permute.xlu0 %2422
        %2426 = vrot.lane.b32.xlu0 %v2379, 80
        %v2427 = vpop.permute.xlu0 %2426
        %2430 = vrot.lane.b32.xlu0 %v2376, 96
        %v2431 = vpop.permute.xlu0 %2430
        %2434 = vrot.lane.b32.xlu0 %v2380, 112
        %v2435 = vpop.permute.xlu0 %2434
        %v2437 = vsel %vm568, %v2285, %v2383
        %v2438 = vsel %vm570, %v2437, %v2387
        %v2439 = vsel %vm572, %v2438, %v2391
        %v2440 = vsel %vm574, %v2439, %v2395
        %v2441 = vsel %vm576, %v2440, %v2399
        %v2442 = vsel %vm578, %v2441, %v2403
        %v2443 = vsel %vm580, %v2442, %v2407
        %v2444 = vsel %vm568, %v2353, %v2411
        %v2445 = vsel %vm570, %v2444, %v2415
        %v2446 = vsel %vm572, %v2445, %v2419
        %v2447 = vsel %vm574, %v2446, %v2423
        %v2448 = vsel %vm576, %v2447, %v2427
        %v2449 = vsel %vm578, %v2448, %v2431
        %v2450 = vsel %vm580, %v2449, %v2435
        %v2453 = vrot.slane %v819, 4
        %v2454 = vrot.slane %v826, 4
        %v2459 = vrot.slane %v1288, 4
        %v2460 = vrot.slane %v1295, 4
        %v2465 = vrot.slane %v1748, 4
        %v2466 = vrot.slane %v1755, 4
        %v2471 = vrot.slane %v2213, 4
        %v2472 = vrot.slane %v2220, 4
        %vm2475 = vcmask 1043456
        %v2476 = vsel %vm2475, %v581, %v2453
        %v2477 = vsel %vm2475, %v588, %v2454
        %v2478 = vsel %vm2475, %v1049, %v2459
        %v2479 = vsel %vm2475, %v1056, %v2460
        %v2480 = vsel %vm2475, %v1518, %v2465
        %v2481 = vsel %vm2475, %v1525, %v2466
        %v2482 = vsel %vm2475, %v1983, %v2471
        %v2483 = vsel %vm2475, %v1990, %v2472
        %v2484 = vpack.c.bf16 %v2478, %v2476
        %v2485 = vpack.c.bf16 %v2479, %v2477
        %v2486 = vpack.c.bf16 %v2482, %v2480
        %v2487 = vpack.c.bf16 %v2483, %v2481
        %v2488 = vpack.c.bf16 %v2443, %v2443
        %v2489 = vpack.c.bf16 %v2450, %v2450
        %v2490 = vld [vmem:[%s1] sm:$0xf]
        %v2491 = vld [vmem:[%s2] sm:$0xff]
        %2493 = vset.pattern.permute.xlu0 0
        %2494 = vperm.xlu0 %2493, %v2491
        %v2495 = vpop.permute.xlu0 %2494
        %vm2497 = vcmask 293888
        %v2499 = vsel %vm2497, %v2490, 0
        %vm2501 = vcmask 1041408
        %v2503 = vsel %vm2501, %v2488, 0
        %v2506 = vsel %vm2501, %v2489, 0
        %2508 = vmatprep.subr.bf16.mxu0 %v2485
        %2509 = vmatpush1.bf16.msra.mxu0 %v2484
        %2510 = vmatprep.subr.bf16.mxu0 %v2487
        %2511 = vmatpush1.bf16.msra.mxu0 %v2486
        %2512 = vmatprep.subr.bf16.mxu0 %v2506
        %2513 = vmatpush1.bf16.msra.mxu0 %v2503
        %2514 = vmatprep.subr.bf16.mxu0 0
        %2515 = vmatpush1.bf16.msra.mxu0 0
        %2516 = vmatprep.subr.bf16.mxu0 0
        %2517 = vmatpush1.bf16.msra.mxu0 0
        %2518 = vmatprep.subr.bf16.mxu0 0
        %2519 = vmatpush1.bf16.msra.mxu0 0
        %2520 = vmatprep.subr.bf16.mxu0 0
        %2521 = vmatpush1.bf16.msra.mxu0 0
        %2522 = vmatprep.subr.bf16.mxu0 0
        %2523 = vmatpush1.bf16.msra.mxu0 0
        %2524 = vmatprep.subr.bf16.mxu0 0
        %2525 = vmatpush1.bf16.msra.mxu0 0
        %2526 = vmatprep.subr.bf16.mxu0 0
        %2527 = vmatpush1.bf16.msra.mxu0 0
        %2528 = vmatprep.subr.bf16.mxu0 0
        %2529 = vmatpush1.bf16.msra.mxu0 0
        %2530 = vmatprep.subr.bf16.mxu0 0
        %2531 = vmatpush1.bf16.msra.mxu0 0
        %2532 = vmatprep.subr.bf16.mxu0 0
        %2533 = vmatpush1.bf16.msra.mxu0 0
        %2534 = vmatprep.subr.bf16.mxu0 0
        %2535 = vmatpush1.bf16.msra.mxu0 0
        %2536 = vmatprep.subr.bf16.mxu0 0
        %2537 = vmatpush1.bf16.msra.mxu0 0
        %2538 = vmatprep.subr.bf16.mxu0 0
        %2539 = vmatpush1.bf16.msra.mxu0 0
        %2540 = vmatprep.mubr.bf16.mxu0 0
        %2541 = vmatmul.mubr.bf16.gmra.mrb[0].mxu0 %v2499
        %v2542 = vpop.f32.mrb[0].mxu0
        %v2543 = vadd.f32 %v2495, %v2542
        %v2544 = vpop.f32.mrb[0].mxu0
        %v2545 = vadd.f32 %v2495, %v2544
        %v2546 = vpop.f32.mrb[0].mxu0
        %v2547 = vpop.f32.mrb[0].mxu0
        %2548 = vdwg.mxu0
        %v2549 = vld [vmem:[%s3] sm:$0xff]
        %v2550 = vld [vmem:[%s4] sm:$0xff]
        %vm2551 = vcmp.ge.f32.partialorder %v2543, 0.0
        %vm2552 = vcmp.ge.f32.partialorder %v2545, 0.0
        %v2553 = vmul.f32 %v2543, 0.02
        %v2554 = vmul.f32 %v2545, 0.02
        %v2555 = vsel %vm2551, %v2543, %v2553
        %v2556 = vsel %vm2552, %v2545, %v2554
        %v2557 = vpack.c.bf16 %v2555, %v2555
        %v2558 = vpack.c.bf16 %v2556, %v2556
        %v2561 = vunpack.c.l.b16 %v2557
        %v2562 = vunpack.c.l.b16 %v2558
        %v2563 = vpack.c.b16 %v2562, %v2561
        %2565 = vst [vmem:[%s350] sm:$0xff] %v2563
        %v2566 = vadd.f32 %v2543, %v2545
        %2567 = vadd.xlane.f32.xlu0 %v2566
        %v2568 = vpop.xlane.xlu0 %2567
        %v2569 = vrot.slane %v2568, 4
        %v2570 = vadd.f32 %v2568, %v2569
        %v2571 = vrot.slane %v2570, 2
        %v2572 = vadd.f32 %v2570, %v2571
        %v2573 = vrot.slane %v2572, 1
        %v2574 = vadd.f32 %v2572, %v2573
        %s2575 = vtos %v2574
        %v2576 = vstv %s2575
        %v2577 = vmul.f32 %v2576, 0.00048828125
        %v2578 = vsub.f32 %v2543, %v2577
        %v2579 = vsub.f32 %v2545, %v2577
        %v2580 = vmul.f32 %v2578, %v2578
        %v2581 = vmul.f32 %v2579, %v2579
        %v2582 = vadd.f32 %v2580, %v2581
        %2583 = vadd.xlane.f32.xlu0 %v2582
        %v2584 = vpop.xlane.xlu0 %2583
        %v2585 = vrot.slane %v2584, 4
        %v2586 = vadd.f32 %v2584, %v2585
        %v2587 = vrot.slane %v2586, 2
        %v2588 = vadd.f32 %v2586, %v2587
        %v2589 = vrot.slane %v2588, 1
        %v2590 = vadd.f32 %v2588, %v2589
        %s2591 = vtos %v2590
        %v2592 = vstv %s2591
        %v2593 = vmul.f32 %v2592, 0.00048828125
        %v2594 = vadd.f32 %v2593, 1e-05
        %v2595 = vrsqrt.pop %v2594
        %v2596 = vmul.f32 %v2549, %v2595
        %2598 = vset.pattern.permute.xlu0 0
        %2599 = vperm.xlu0 %2598, %v2596
        %v2600 = vpop.permute.xlu0 %2599
        %v2602 = vmul.f32 %v2578, %v2600
        %v2603 = vmul.f32 %v2579, %v2600
        %2605 = vset.pattern.permute.xlu0 0
        %2606 = vperm.xlu0 %2605, %v2550
        %v2607 = vpop.permute.xlu0 %2606
        %v2609 = vadd.f32 %v2602, %v2607
        %v2610 = vadd.f32 %v2603, %v2607
        %vm2611 = vcmp.ge.f32.partialorder %v2609, 0.0
        %vm2612 = vcmp.ge.f32.partialorder %v2610, 0.0
        %v2613 = vmul.f32 %v2609, 0.02
        %v2614 = vmul.f32 %v2610, 0.02
        %v2615 = vsel %vm2611, %v2609, %v2613
        %v2616 = vsel %vm2612, %v2610, %v2614
        %v2617 = vpack.c.bf16 %v2615, %v2615
        %v2618 = vpack.c.bf16 %v2616, %v2616
        %v2621 = vunpack.c.l.b16 %v2617
        %v2622 = vunpack.c.l.b16 %v2618
        %v2623 = vpack.c.b16 %v2622, %v2621
        %2625 = vst [vmem:[%s345] sm:$0xff] %v2623
        %p2626 = scmp.lt.s32.totalorder %s18, 1
        %s2627 = scalar_select %p2626, %s18, 1
        %s2628 = smul.addr %s2627, 2
        %s2629 = smul.addr %s2628, 4
        %s2630 = scalar_lea.vmem %s5, %s2629
        %p2631 = scmp.lt.s32.totalorder %s18, 1
        %s2632 = scalar_select %p2631, %s18, 1
        %s2633 = smul.addr %s2632, 2
        %s2634 = smul.addr %s2633, 4
        %s2635 = scalar_lea.vmem %s6, %s2634
        // Predicated region
        $region82: #{conv_layer_forward.1} parent=76 // pred_check
          %p2636 = pneg %p146
        $region83: #{conv_layer_forward.1} parent=76 // pred_check_branch
          %2638 = sbr.rel (%p2636) target = $region85
        $region84: #{conv_layer_forward.1} parent=76 // pred_region
          _
        $region85: #{conv_layer_forward.1} parent=76 // pred_fallthru
          _
        // Predicated region
        $region86: #{conv_layer_forward.1} parent=76 // pred_check
          %p2639 = pneg %p172
        $region87: #{conv_layer_forward.1} parent=76 // pred_check_branch
          %2641 = sbr.rel (%p2639) target = $region89
        $region88: #{conv_layer_forward.1} parent=76 // pred_region
          _
        $region89: #{conv_layer_forward.1} parent=76 // pred_fallthru
          _
      $region77: #{conv_layer_forward.1} parent=5 // pred_fallthru
        _
      %p2642 = scmp.le.s32.totalorder 2, %s13
      // Predicated region
      $region90: #{conv_layer_forward.1} parent=5 // pred_check
        %p2643 = pneg %p2642
      $region91: #{conv_layer_forward.1} parent=5 // pred_check_branch
        %2645 = sbr.rel (%p2643) target = $region93
      $region92: #{conv_layer_forward.1} parent=5 // pred_region
        %s2646 = ssub.s32 %s13, 2
        // Predicated region
        $region94: #{conv_layer_forward.1} parent=92 // pred_check
          %p2647 = pneg %p152
        $region95: #{conv_layer_forward.1} parent=92 // pred_check_branch
          %2649 = sbr.rel (%p2647) target = $region97
        $region96: #{conv_layer_forward.1} parent=92 // pred_region
          %p2650 = scmp.lt.s32.totalorder %s19, 1
          %s2651 = scalar_select %p2650, %s19, 1
          %s2652 = smul.addr %s2651, 2
          %s2653 = smul.addr %s2652, 4
          %s2654 = scalar_lea.vmem %s5, %s2653
        $region97: #{conv_layer_forward.1} parent=92 // pred_fallthru
          _
        // Predicated region
        $region98: #{conv_layer_forward.1} parent=92 // pred_check
          %p2655 = pneg %p178
        $region99: #{conv_layer_forward.1} parent=92 // pred_check_branch
          %2657 = sbr.rel (%p2655) target = $region101
        $region100: #{conv_layer_forward.1} parent=92 // pred_region
          %p2658 = scmp.lt.s32.totalorder %s19, 1
          %s2659 = scalar_select %p2658, %s19, 1
          %s2660 = smul.addr %s2659, 2
          %s2661 = smul.addr %s2660, 4
          %s2662 = scalar_lea.vmem %s6, %s2661
        $region101: #{conv_layer_forward.1} parent=92 // pred_fallthru
          _
      $region93: #{conv_layer_forward.1} parent=5 // pred_fallthru
        _
    $region6: #{conv_layer_forward.1} parent=1 // loop_footer
      %s17 = sadd.s32 1, %s13
    $region7: #{conv_layer_forward.1} parent=1 // loop_footer_branch
      %12 = sbr.rel target = $region3
    $region8: #{conv_layer_forward.1} parent=1 // loop_exit
      _

</llo_original>
